<compile_context>
chip_gen: v7x
topology: tpu7x:2x2x1
jax: 0.10.0
libtpu: 0.0.40
codegen_flags: <defaults>
</compile_context>

<pallas_src>
import functools

import jax
import jax.numpy as jnp
from jax.experimental import pallas as pl
from jax.experimental.pallas import tpu as pltpu

BN_EPS = 1e-5          # torch.nn.BatchNorm1d default
LRELU_SLOPE = 0.01     # torch.nn.LeakyReLU default

_VMEM_SPEC = pl.BlockSpec(memory_space=pltpu.MemorySpace.VMEM)

# fused encoder: w1xr,w1xt,w1e,b1,g1,be1, w2,b2,g2,be2, w3,b3,g3,be3,
#                wz,bz (block-diag -> [z_rna|z_tcr]), wmu,bmu, wlv,blv
_N_ENC_PARAMS = 20
# fused decoder: w1z,w1e,b1,g1,be1, w2,b2,g2,be2, w3,b3,g3,be3, wo,bo
_N_DEC_PARAMS = 15


# -----------------------------------------------------------------------------
# Fused Pallas kernel: whole Generator.forward in one call
# -----------------------------------------------------------------------------
def _generator_kernel(dimz, dimrna, dimtcr, *refs):
    x_rna_ref, x_tcr_ref, emb_ref, eps_ref = refs[:4]
    out_ref = refs[-1]
    it = iter(refs[4:-1])

    def take(n):
        return [next(it) for _ in range(n)]

    enc = take(_N_ENC_PARAMS)
    dec = take(_N_DEC_PARAMS)

    def linear(h, w_ref, b_ref):
        return jnp.dot(h, w_ref[...], preferred_element_type=jnp.float32) + b_ref[...]

    def bn_lrelu(h, g_ref, be_ref):
        # BatchNorm1d with batch statistics (biased variance, torch-style),
        # followed by LeakyReLU(0.01).
        mean = jnp.mean(h, axis=0, keepdims=True)
        var = jnp.mean(jnp.square(h - mean), axis=0, keepdims=True)
        hn = (h - mean) * jax.lax.rsqrt(var + BN_EPS)
        hn = hn * g_ref[...] + be_ref[...]
        return jnp.where(hn > 0, hn, LRELU_SLOPE * hn)

    x_rna = x_rna_ref[...]
    x_tcr = x_tcr_ref[...]
    emb = emb_ref[...]

    # ---------------- fused dual encoder -----------------------------------
    (w1xr, w1xt, w1e, b1, g1, be1,
     w2, b2, g2, be2,
     w3, b3, g3, be3,
     wz, bz, wmu, bmu, wlv, blv) = enc

    # concat([x, emb]) @ W1  ==  x @ W1x + emb @ W1e  (split-K), both encoders
    # fused along the output-feature axis.
    h = (jnp.dot(x_rna, w1xr[...], preferred_element_type=jnp.float32)
         + jnp.dot(x_tcr, w1xt[...], preferred_element_type=jnp.float32)
         + jnp.dot(emb, w1e[...], preferred_element_type=jnp.float32)
         + b1[...])
    h = bn_lrelu(h, g1, be1)
    h = bn_lrelu(linear(h, w2, b2), g2, be2)
    h = bn_lrelu(linear(h, w3, b3), g3, be3)

    z_heads = linear(h, wz, bz)          # [N, 4*dimz] = [mu_r|lv_r|mu_t|lv_t]
    mu = linear(h, wmu, bmu)             # 0.5*(mu_rna+mu_tcr) at weight level
    logvar = linear(h, wlv, blv)         # 0.5*(lv_rna+lv_tcr) at weight level

    # reparameterize: z = eps * exp(0.5 * logvar) + mu
    z = eps_ref[...] * jnp.exp(0.5 * logvar) + mu

    # ---------------- fused dual decoder ------------------------------------
    (dw1z, dw1e, db1, dg1, dbe1,
     dw2, db2, dg2, dbe2,
     dw3, db3, dg3, dbe3, dwo, dbo) = dec

    hd = (jnp.dot(z, dw1z[...], preferred_element_type=jnp.float32)
          + jnp.dot(emb, dw1e[...], preferred_element_type=jnp.float32)
          + db1[...])
    hd = bn_lrelu(hd, dg1, dbe1)
    hd = bn_lrelu(linear(hd, dw2, db2), dg2, dbe2)
    hd = bn_lrelu(linear(hd, dw3, db3), dg3, dbe3)
    recon = linear(hd, dwo, dbo)         # [N, dimrna+dimtcr] = [recon_rna|recon_tcr]

    # ---------------- one lane-dense packed output slab ---------------------
    n = out_ref.shape[0]
    used = dimrna + dimtcr + 6 * dimz
    pad = out_ref.shape[1] - used
    parts = [recon, mu, logvar, z_heads]
    if pad > 0:
        parts.append(jnp.zeros((n, pad), jnp.float32))
    out_ref[...] = jnp.concatenate(parts, axis=1)   # single full-width store


# -----------------------------------------------------------------------------
# Generator.forward wrapper (single pallas_call)
# -----------------------------------------------------------------------------
@jax.jit
def generator_forward(params, x, embeddings, eps):
    """x = (x_rna, x_tcr); embeddings = list of [N, dim_state_embedding]; eps ~ N(0,1)."""
    x_rna, x_tcr = x
    n, dimrna = x_rna.shape
    dimtcr = x_tcr.shape[1]
    dimz = eps.shape[1]

    emb = jnp.concatenate(embeddings, axis=-1)   # tiny [N, 3*dse] conditioning block

    total = dimrna + dimtcr + 6 * dimz
    out_w = ((total + 127) // 128) * 128         # lane-dense packed output width

    flat = [x_rna, x_tcr, emb, eps, *params["enc"], *params["dec"]]

    slab = pl.pallas_call(
        functools.partial(_generator_kernel, dimz, dimrna, dimtcr),
        out_shape=jax.ShapeDtypeStruct((n, out_w), jnp.float32),
        in_specs=[_VMEM_SPEC] * len(flat),
        out_specs=_VMEM_SPEC,
    )(*flat)

    o = dimrna + dimtcr
    recon_rna = slab[:, :dimrna]
    recon_tcr = slab[:, dimrna:o]
    mu = slab[:, o:o + dimz]
    logvar = slab[:, o + dimz:o + 2 * dimz]
    z_rna = slab[:, o + 2 * dimz:o + 4 * dimz]
    z_tcr = slab[:, o + 4 * dimz:o + 6 * dimz]
    return recon_rna, recon_tcr, (mu, logvar, (z_rna, z_tcr))


# -----------------------------------------------------------------------------
# Parameter construction (deterministic, synthetic) + kernel-layout prep
# -----------------------------------------------------------------------------
def make_mlp_params(key, dim_in, dim_out, nbase, decoder=False):
    layers = [1, 2, 4]
    if decoder:
        layers = layers[::-1]
    dims = [dim_in, nbase // layers[0], nbase // layers[1], nbase // layers[2], dim_out]
    keys = jax.random.split(key, 8)
    p = {}
    for i, (wn, bn) in enumerate([("w1", "b1"), ("w2", "b2"), ("w3", "b3"), ("wo", "bo")]):
        p[wn] = 0.05 * jax.random.normal(keys[2 * i], (dims[i], dims[i + 1]), jnp.float32)
        p[bn] = 0.05 * jax.random.normal(keys[2 * i + 1], (1, dims[i + 1]), jnp.float32)
    for j, h in enumerate(dims[1:4], start=1):        # BN affine: gamma=1, beta=0
        p[f"g{j}"] = jnp.ones((1, h), jnp.float32)
        p[f"be{j}"] = jnp.zeros((1, h), jnp.float32)
    return p


def _blockdiag(a, b):
    top = jnp.concatenate([a, jnp.zeros((a.shape[0], b.shape[1]), a.dtype)], axis=1)
    bot = jnp.concatenate([jnp.zeros((b.shape[0], a.shape[1]), a.dtype), b], axis=1)
    return jnp.concatenate([top, bot], axis=0)


def _prep_encoders_fused(raw_r, raw_t, dimrna, dimtcr, dimz):
    """Fuse encoder_rna and encoder_tcr along the feature axis.

    Layer 1: x parts are zero-padded column blocks (different x inputs), the
    shared-embedding part is a plain column concat.  Deeper layers are
    block-diagonal.  BatchNorm is per-feature, so batch stats are unchanged.
    The mu/logvar heads are pre-averaged at the weight level.
    """
    h1_r = raw_r["w1"].shape[1]
    h1_t = raw_t["w1"].shape[1]
    w1xr = jnp.concatenate(
        [raw_r["w1"][:dimrna, :], jnp.zeros((dimrna, h1_t), jnp.float32)], axis=1)
    w1xt = jnp.concatenate(
        [jnp.zeros((dimtcr, h1_r), jnp.float32), raw_t["w1"][:dimtcr, :]], axis=1)
    w1e = jnp.concatenate([raw_r["w1"][dimrna:, :], raw_t["w1"][dimtcr:, :]], axis=1)

    def cat(name):
        return jnp.concatenate([raw_r[name], raw_t[name]], axis=1)

    wz = _blockdiag(raw_r["wo"], raw_t["wo"])   # -> [mu_r | lv_r | mu_t | lv_t]
    bz = cat("bo")
    wmu = 0.5 * jnp.concatenate([raw_r["wo"][:, :dimz], raw_t["wo"][:, :dimz]], axis=0)
    bmu = 0.5 * (raw_r["bo"][:, :dimz] + raw_t["bo"][:, :dimz])
    wlv = 0.5 * jnp.concatenate([raw_r["wo"][:, dimz:], raw_t["wo"][:, dimz:]], axis=0)
    blv = 0.5 * (raw_r["bo"][:, dimz:] + raw_t["bo"][:, dimz:])

    return [w1xr, w1xt, w1e, cat("b1"), cat("g1"), cat("be1"),
            _blockdiag(raw_r["w2"], raw_t["w2"]), cat("b2"), cat("g2"), cat("be2"),
            _blockdiag(raw_r["w3"], raw_t["w3"]), cat("b3"), cat("g3"), cat("be3"),
            wz, bz, wmu, bmu, wlv, blv]


def _prep_decoders_fused(raw_r, raw_t, dimz):
    """Fuse decoder_rna and decoder_tcr along the feature axis (shared input)."""
    def cat(name):
        return jnp.concatenate([raw_r[name], raw_t[name]], axis=1)
    w1z = jnp.concatenate([raw_r["w1"][:dimz, :], raw_t["w1"][:dimz, :]], axis=1)
    w1e = jnp.concatenate([raw_r["w1"][dimz:, :], raw_t["w1"][dimz:, :]], axis=1)
    return [w1z, w1e, cat("b1"), cat("g1"), cat("be1"),
            _blockdiag(raw_r["w2"], raw_t["w2"]), cat("b2"), cat("g2"), cat("be2"),
            _blockdiag(raw_r["w3"], raw_t["w3"]), cat("b3"), cat("g3"), cat("be3"),
            _blockdiag(raw_r["wo"], raw_t["wo"]), cat("bo")]


def make_generator_params(key, dimrna, dimtcr, dimz, dim_state_embedding, nbase):
    n_cond = 3 * dim_state_embedding
    k = jax.random.split(key, 4)
    raw = {
        "enc_rna": make_mlp_params(k[0], dimrna + n_cond, dimz * 2, nbase),
        "enc_tcr": make_mlp_params(k[1], dimtcr + n_cond, dimz * 2, nbase),
        "dec_rna": make_mlp_params(k[2], dimz + n_cond, dimrna, nbase, decoder=True),
        "dec_tcr": make_mlp_params(k[3], dimz + n_cond, dimtcr, nbase, decoder=True),
    }
    kernel_params = {
        "enc": _prep_encoders_fused(raw["enc_rna"], raw["enc_tcr"], dimrna, dimtcr, dimz),
        "dec": _prep_decoders_fused(raw["dec_rna"], raw["dec_tcr"], dimz),
    }
    # TODO(synk): bloodtumor/cancertype/patient embedding buffers,
    # mlp_patient_embeddings_*, sample(), map_to_patient_embeddings() and
    # groupby_mean() are unused in Generator.forward(); not translated.
    return kernel_params, raw


# -----------------------------------------------------------------------------
# Pure-JAX reference (unfused) for correctness checking
# -----------------------------------------------------------------------------
def _mlp_ref(p, x):
    hp = jax.lax.Precision.HIGHEST

    def bn_lrelu(h, g, be):
        mean = jnp.mean(h, axis=0, keepdims=True)
        var = jnp.mean(jnp.square(h - mean), axis=0, keepdims=True)
        hn = (h - mean) * jax.lax.rsqrt(var + BN_EPS) * g + be
        return jnp.where(hn > 0, hn, LRELU_SLOPE * hn)

    h = bn_lrelu(jnp.dot(x, p["w1"], precision=hp) + p["b1"], p["g1"], p["be1"])
    h = bn_lrelu(jnp.dot(h, p["w2"], precision=hp) + p["b2"], p["g2"], p["be2"])
    h = bn_lrelu(jnp.dot(h, p["w3"], precision=hp) + p["b3"], p["g3"], p["be3"])
    return jnp.dot(h, p["wo"], precision=hp) + p["bo"]


def generator_forward_ref(raw, x, embeddings, eps, dimz):
    emb = jnp.concatenate(embeddings, axis=-1)
    x_rna = jnp.concatenate([x[0], emb], axis=-1)
    x_tcr = jnp.concatenate([x[1], emb], axis=-1)
    z_rna = _mlp_ref(raw["enc_rna"], x_rna)
    z_tcr = _mlp_ref(raw["enc_tcr"], x_tcr)
    mu = 0.5 * (z_rna[:, :dimz] + z_tcr[:, :dimz])
    logvar = 0.5 * (z_rna[:, dimz:] + z_tcr[:, dimz:])
    z = eps * jnp.exp(0.5 * logvar) + mu
    shared = jnp.concatenate([z, emb], axis=-1)
    recon_tcr = _mlp_ref(raw["dec_tcr"], shared)
    recon_rna = _mlp_ref(raw["dec_rna"], shared)
    return recon_rna, recon_tcr, (mu, logvar, (z_rna, z_tcr))


# -----------------------------------------------------------------------------
if __name__ == "__main__":
    N = 8                     # batch (multiple of 8 -> clean f32 sublane layout)
    DIMRNA = 32
    DIMTCR = 24
    DIMZ = 8
    DIM_STATE_EMB = 4
    NBASE = 32                # args.n_channels_base

    root = jax.random.PRNGKey(0)
    k_param, k_xr, k_xt, k_e0, k_e1, k_e2, k_eps = jax.random.split(root, 7)

    params, raw_params = make_generator_params(
        k_param, DIMRNA, DIMTCR, DIMZ, DIM_STATE_EMB, NBASE)

    x_rna_in = jax.random.normal(k_xr, (N, DIMRNA), jnp.float32)
    x_tcr_in = jax.random.normal(k_xt, (N, DIMTCR), jnp.float32)
    embeddings = [
        jax.random.normal(k_e0, (N, DIM_STATE_EMB), jnp.float32),
        jax.random.normal(k_e1, (N, DIM_STATE_EMB), jnp.float32),
        jax.random.normal(k_e2, (N, DIM_STATE_EMB), jnp.float32),
    ]
    # eps kept as an explicit input (exact N(0,1) semantics of torch's
    # .normal_()); it is a single tiny [N, dimz] DMA into the fused kernel.
    eps = jax.random.normal(k_eps, (N, DIMZ), jnp.float32)

    recon_rna, recon_tcr, (mu, logvar, (z_rna, z_tcr)) = generator_forward(
        params, (x_rna_in, x_tcr_in), embeddings, eps)
    jax.block_until_ready((recon_rna, recon_tcr, mu, logvar, z_rna, z_tcr))

    # shape checks
    assert recon_rna.shape == (N, DIMRNA)
    assert recon_tcr.shape == (N, DIMTCR)
    assert mu.shape == (N, DIMZ) and logvar.shape == (N, DIMZ)
    assert z_rna.shape == (N, 2 * DIMZ) and z_tcr.shape == (N, 2 * DIMZ)

    # numerical check against the unfused pure-JAX reference
    r_rna, r_tcr, (r_mu, r_lv, (r_zr, r_zt)) = generator_forward_ref(
        raw_params, (x_rna_in, x_tcr_in), embeddings, eps, DIMZ)
    for got, ref in ((recon_rna, r_rna), (recon_tcr, r_tcr), (mu, r_mu),
                     (logvar, r_lv), (z_rna, r_zr), (z_tcr, r_zt)):
        assert bool(jnp.all(jnp.isfinite(got)))
        assert bool(jnp.allclose(got, ref, atol=1e-2, rtol=1e-2))

    print("KERNEL_OK")
</pallas_src>

<mosaic_0001>
module attributes {stable_mosaic.version = 11 : i64} {
  func.func @_generator_kernel(%arg0: memref<8x32xf32, #tpu.memory_space<vmem>>, %arg1: memref<8x24xf32, #tpu.memory_space<vmem>>, %arg2: memref<8x12xf32, #tpu.memory_space<vmem>>, %arg3: memref<8x8xf32, #tpu.memory_space<vmem>>, %arg4: memref<32x64xf32, #tpu.memory_space<vmem>>, %arg5: memref<24x64xf32, #tpu.memory_space<vmem>>, %arg6: memref<12x64xf32, #tpu.memory_space<vmem>>, %arg7: memref<1x64xf32, #tpu.memory_space<vmem>>, %arg8: memref<1x64xf32, #tpu.memory_space<vmem>>, %arg9: memref<1x64xf32, #tpu.memory_space<vmem>>, %arg10: memref<64x32xf32, #tpu.memory_space<vmem>>, %arg11: memref<1x32xf32, #tpu.memory_space<vmem>>, %arg12: memref<1x32xf32, #tpu.memory_space<vmem>>, %arg13: memref<1x32xf32, #tpu.memory_space<vmem>>, %arg14: memref<32x16xf32, #tpu.memory_space<vmem>>, %arg15: memref<1x16xf32, #tpu.memory_space<vmem>>, %arg16: memref<1x16xf32, #tpu.memory_space<vmem>>, %arg17: memref<1x16xf32, #tpu.memory_space<vmem>>, %arg18: memref<16x32xf32, #tpu.memory_space<vmem>>, %arg19: memref<1x32xf32, #tpu.memory_space<vmem>>, %arg20: memref<16x8xf32, #tpu.memory_space<vmem>>, %arg21: memref<1x8xf32, #tpu.memory_space<vmem>>, %arg22: memref<16x8xf32, #tpu.memory_space<vmem>>, %arg23: memref<1x8xf32, #tpu.memory_space<vmem>>, %arg24: memref<8x16xf32, #tpu.memory_space<vmem>>, %arg25: memref<12x16xf32, #tpu.memory_space<vmem>>, %arg26: memref<1x16xf32, #tpu.memory_space<vmem>>, %arg27: memref<1x16xf32, #tpu.memory_space<vmem>>, %arg28: memref<1x16xf32, #tpu.memory_space<vmem>>, %arg29: memref<16x32xf32, #tpu.memory_space<vmem>>, %arg30: memref<1x32xf32, #tpu.memory_space<vmem>>, %arg31: memref<1x32xf32, #tpu.memory_space<vmem>>, %arg32: memref<1x32xf32, #tpu.memory_space<vmem>>, %arg33: memref<32x64xf32, #tpu.memory_space<vmem>>, %arg34: memref<1x64xf32, #tpu.memory_space<vmem>>, %arg35: memref<1x64xf32, #tpu.memory_space<vmem>>, %arg36: memref<1x64xf32, #tpu.memory_space<vmem>>, %arg37: memref<64x56xf32, #tpu.memory_space<vmem>>, %arg38: memref<1x56xf32, #tpu.memory_space<vmem>>, %arg39: memref<8x128xf32, #tpu.memory_space<vmem>>) attributes {dimension_semantics = [], scalar_prefetch = 0 : i64, scratch_operands = 0 : i64, tpu.core_type = #tpu.core_type<tc>} {
    %c0 = arith.constant 0 : index
    %c0_0 = arith.constant 0 : index
    %0 = vector.load %arg0[%c0, %c0_0] : memref<8x32xf32, #tpu.memory_space<vmem>>, vector<8x32xf32>
    %c0_1 = arith.constant 0 : index
    %c0_2 = arith.constant 0 : index
    %1 = vector.load %arg1[%c0_1, %c0_2] : memref<8x24xf32, #tpu.memory_space<vmem>>, vector<8x24xf32>
    %c0_3 = arith.constant 0 : index
    %c0_4 = arith.constant 0 : index
    %2 = vector.load %arg2[%c0_3, %c0_4] : memref<8x12xf32, #tpu.memory_space<vmem>>, vector<8x12xf32>
    %c0_5 = arith.constant 0 : index
    %c0_6 = arith.constant 0 : index
    %3 = vector.load %arg4[%c0_5, %c0_6] : memref<32x64xf32, #tpu.memory_space<vmem>>, vector<32x64xf32>
    %cst = arith.constant dense<0.000000e+00> : vector<8x64xf32>
    %4 = tpu.matmul %0, %3, %cst {dimension_numbers = #tpu.dot_dimension_numbers<[1], [0], [0], [1], [0, 0, 1, 1], [], []>} : vector<8x32xf32>, vector<32x64xf32>, vector<8x64xf32> -> vector<8x64xf32>
    %c0_7 = arith.constant 0 : index
    %c0_8 = arith.constant 0 : index
    %5 = vector.load %arg5[%c0_7, %c0_8] : memref<24x64xf32, #tpu.memory_space<vmem>>, vector<24x64xf32>
    %cst_9 = arith.constant dense<0.000000e+00> : vector<8x64xf32>
    %6 = tpu.matmul %1, %5, %cst_9 {dimension_numbers = #tpu.dot_dimension_numbers<[1], [0], [0], [1], [0, 0, 1, 1], [], []>} : vector<8x24xf32>, vector<24x64xf32>, vector<8x64xf32> -> vector<8x64xf32>
    %7 = arith.addf %4, %6 : vector<8x64xf32>
    %c0_10 = arith.constant 0 : index
    %c0_11 = arith.constant 0 : index
    %8 = vector.load %arg6[%c0_10, %c0_11] : memref<12x64xf32, #tpu.memory_space<vmem>>, vector<12x64xf32>
    %cst_12 = arith.constant dense<0.000000e+00> : vector<8x64xf32>
    %9 = tpu.matmul %2, %8, %cst_12 {dimension_numbers = #tpu.dot_dimension_numbers<[1], [0], [0], [1], [0, 0, 1, 1], [], []>} : vector<8x12xf32>, vector<12x64xf32>, vector<8x64xf32> -> vector<8x64xf32>
    %10 = arith.addf %7, %9 : vector<8x64xf32>
    %c0_13 = arith.constant 0 : index
    %c0_14 = arith.constant 0 : index
    %11 = vector.load %arg7[%c0_13, %c0_14] : memref<1x64xf32, #tpu.memory_space<vmem>>, vector<1x64xf32>
    %12 = vector.broadcast %11 : vector<1x64xf32> to vector<8x64xf32>
    %13 = arith.addf %10, %12 : vector<8x64xf32>
    %cst_15 = arith.constant dense<0.000000e+00> : vector<64xf32>
    %14 = vector.multi_reduction <add>, %13, %cst_15 [0] : vector<8x64xf32> to vector<64xf32>
    %15 = vector.shape_cast %14 : vector<64xf32> to vector<1x64xf32>
    %cst_16 = arith.constant 8.000000e+00 : f32
    %16 = vector.broadcast %cst_16 : f32 to vector<1x64xf32>
    %17 = arith.divf %15, %16 : vector<1x64xf32>
    %18 = vector.broadcast %17 : vector<1x64xf32> to vector<8x64xf32>
    %19 = arith.subf %13, %18 : vector<8x64xf32>
    %20 = arith.mulf %19, %19 : vector<8x64xf32>
    %cst_17 = arith.constant dense<0.000000e+00> : vector<64xf32>
    %21 = vector.multi_reduction <add>, %20, %cst_17 [0] : vector<8x64xf32> to vector<64xf32>
    %22 = vector.shape_cast %21 : vector<64xf32> to vector<1x64xf32>
    %cst_18 = arith.constant 8.000000e+00 : f32
    %23 = vector.broadcast %cst_18 : f32 to vector<1x64xf32>
    %24 = arith.divf %22, %23 : vector<1x64xf32>
    %25 = vector.broadcast %17 : vector<1x64xf32> to vector<8x64xf32>
    %26 = arith.subf %13, %25 : vector<8x64xf32>
    %cst_19 = arith.constant 9.99999974E-6 : f32
    %27 = vector.broadcast %cst_19 : f32 to vector<1x64xf32>
    %28 = arith.addf %24, %27 : vector<1x64xf32>
    %29 = math.rsqrt %28 : vector<1x64xf32>
    %30 = vector.broadcast %29 : vector<1x64xf32> to vector<8x64xf32>
    %31 = arith.mulf %26, %30 : vector<8x64xf32>
    %c0_20 = arith.constant 0 : index
    %c0_21 = arith.constant 0 : index
    %32 = vector.load %arg8[%c0_20, %c0_21] : memref<1x64xf32, #tpu.memory_space<vmem>>, vector<1x64xf32>
    %33 = vector.broadcast %32 : vector<1x64xf32> to vector<8x64xf32>
    %34 = arith.mulf %31, %33 : vector<8x64xf32>
    %c0_22 = arith.constant 0 : index
    %c0_23 = arith.constant 0 : index
    %35 = vector.load %arg9[%c0_22, %c0_23] : memref<1x64xf32, #tpu.memory_space<vmem>>, vector<1x64xf32>
    %36 = vector.broadcast %35 : vector<1x64xf32> to vector<8x64xf32>
    %37 = arith.addf %34, %36 : vector<8x64xf32>
    %cst_24 = arith.constant 0.000000e+00 : f32
    %38 = vector.broadcast %cst_24 : f32 to vector<8x64xf32>
    %39 = arith.cmpf ogt, %37, %38 : vector<8x64xf32>
    %cst_25 = arith.constant 0.00999999977 : f32
    %40 = vector.broadcast %cst_25 : f32 to vector<8x64xf32>
    %41 = arith.mulf %40, %37 : vector<8x64xf32>
    %42 = arith.select %39, %37, %41 : vector<8x64xi1>, vector<8x64xf32>
    %c0_26 = arith.constant 0 : index
    %c0_27 = arith.constant 0 : index
    %43 = vector.load %arg10[%c0_26, %c0_27] : memref<64x32xf32, #tpu.memory_space<vmem>>, vector<64x32xf32>
    %cst_28 = arith.constant dense<0.000000e+00> : vector<8x32xf32>
    %44 = tpu.matmul %42, %43, %cst_28 {dimension_numbers = #tpu.dot_dimension_numbers<[1], [0], [0], [1], [0, 0, 1, 1], [], []>} : vector<8x64xf32>, vector<64x32xf32>, vector<8x32xf32> -> vector<8x32xf32>
    %c0_29 = arith.constant 0 : index
    %c0_30 = arith.constant 0 : index
    %45 = vector.load %arg11[%c0_29, %c0_30] : memref<1x32xf32, #tpu.memory_space<vmem>>, vector<1x32xf32>
    %46 = vector.broadcast %45 : vector<1x32xf32> to vector<8x32xf32>
    %47 = arith.addf %44, %46 : vector<8x32xf32>
    %cst_31 = arith.constant dense<0.000000e+00> : vector<32xf32>
    %48 = vector.multi_reduction <add>, %47, %cst_31 [0] : vector<8x32xf32> to vector<32xf32>
    %49 = vector.shape_cast %48 : vector<32xf32> to vector<1x32xf32>
    %cst_32 = arith.constant 8.000000e+00 : f32
    %50 = vector.broadcast %cst_32 : f32 to vector<1x32xf32>
    %51 = arith.divf %49, %50 : vector<1x32xf32>
    %52 = vector.broadcast %51 : vector<1x32xf32> to vector<8x32xf32>
    %53 = arith.subf %47, %52 : vector<8x32xf32>
    %54 = arith.mulf %53, %53 : vector<8x32xf32>
    %cst_33 = arith.constant dense<0.000000e+00> : vector<32xf32>
    %55 = vector.multi_reduction <add>, %54, %cst_33 [0] : vector<8x32xf32> to vector<32xf32>
    %56 = vector.shape_cast %55 : vector<32xf32> to vector<1x32xf32>
    %cst_34 = arith.constant 8.000000e+00 : f32
    %57 = vector.broadcast %cst_34 : f32 to vector<1x32xf32>
    %58 = arith.divf %56, %57 : vector<1x32xf32>
    %59 = vector.broadcast %51 : vector<1x32xf32> to vector<8x32xf32>
    %60 = arith.subf %47, %59 : vector<8x32xf32>
    %cst_35 = arith.constant 9.99999974E-6 : f32
    %61 = vector.broadcast %cst_35 : f32 to vector<1x32xf32>
    %62 = arith.addf %58, %61 : vector<1x32xf32>
    %63 = math.rsqrt %62 : vector<1x32xf32>
    %64 = vector.broadcast %63 : vector<1x32xf32> to vector<8x32xf32>
    %65 = arith.mulf %60, %64 : vector<8x32xf32>
    %c0_36 = arith.constant 0 : index
    %c0_37 = arith.constant 0 : index
    %66 = vector.load %arg12[%c0_36, %c0_37] : memref<1x32xf32, #tpu.memory_space<vmem>>, vector<1x32xf32>
    %67 = vector.broadcast %66 : vector<1x32xf32> to vector<8x32xf32>
    %68 = arith.mulf %65, %67 : vector<8x32xf32>
    %c0_38 = arith.constant 0 : index
    %c0_39 = arith.constant 0 : index
    %69 = vector.load %arg13[%c0_38, %c0_39] : memref<1x32xf32, #tpu.memory_space<vmem>>, vector<1x32xf32>
    %70 = vector.broadcast %69 : vector<1x32xf32> to vector<8x32xf32>
    %71 = arith.addf %68, %70 : vector<8x32xf32>
    %cst_40 = arith.constant 0.000000e+00 : f32
    %72 = vector.broadcast %cst_40 : f32 to vector<8x32xf32>
    %73 = arith.cmpf ogt, %71, %72 : vector<8x32xf32>
    %cst_41 = arith.constant 0.00999999977 : f32
    %74 = vector.broadcast %cst_41 : f32 to vector<8x32xf32>
    %75 = arith.mulf %74, %71 : vector<8x32xf32>
    %76 = arith.select %73, %71, %75 : vector<8x32xi1>, vector<8x32xf32>
    %c0_42 = arith.constant 0 : index
    %c0_43 = arith.constant 0 : index
    %77 = vector.load %arg14[%c0_42, %c0_43] : memref<32x16xf32, #tpu.memory_space<vmem>>, vector<32x16xf32>
    %cst_44 = arith.constant dense<0.000000e+00> : vector<8x16xf32>
    %78 = tpu.matmul %76, %77, %cst_44 {dimension_numbers = #tpu.dot_dimension_numbers<[1], [0], [0], [1], [0, 0, 1, 1], [], []>} : vector<8x32xf32>, vector<32x16xf32>, vector<8x16xf32> -> vector<8x16xf32>
    %c0_45 = arith.constant 0 : index
    %c0_46 = arith.constant 0 : index
    %79 = vector.load %arg15[%c0_45, %c0_46] : memref<1x16xf32, #tpu.memory_space<vmem>>, vector<1x16xf32>
    %80 = vector.broadcast %79 : vector<1x16xf32> to vector<8x16xf32>
    %81 = arith.addf %78, %80 : vector<8x16xf32>
    %cst_47 = arith.constant dense<0.000000e+00> : vector<16xf32>
    %82 = vector.multi_reduction <add>, %81, %cst_47 [0] : vector<8x16xf32> to vector<16xf32>
    %83 = vector.shape_cast %82 : vector<16xf32> to vector<1x16xf32>
    %cst_48 = arith.constant 8.000000e+00 : f32
    %84 = vector.broadcast %cst_48 : f32 to vector<1x16xf32>
    %85 = arith.divf %83, %84 : vector<1x16xf32>
    %86 = vector.broadcast %85 : vector<1x16xf32> to vector<8x16xf32>
    %87 = arith.subf %81, %86 : vector<8x16xf32>
    %88 = arith.mulf %87, %87 : vector<8x16xf32>
    %cst_49 = arith.constant dense<0.000000e+00> : vector<16xf32>
    %89 = vector.multi_reduction <add>, %88, %cst_49 [0] : vector<8x16xf32> to vector<16xf32>
    %90 = vector.shape_cast %89 : vector<16xf32> to vector<1x16xf32>
    %cst_50 = arith.constant 8.000000e+00 : f32
    %91 = vector.broadcast %cst_50 : f32 to vector<1x16xf32>
    %92 = arith.divf %90, %91 : vector<1x16xf32>
    %93 = vector.broadcast %85 : vector<1x16xf32> to vector<8x16xf32>
    %94 = arith.subf %81, %93 : vector<8x16xf32>
    %cst_51 = arith.constant 9.99999974E-6 : f32
    %95 = vector.broadcast %cst_51 : f32 to vector<1x16xf32>
    %96 = arith.addf %92, %95 : vector<1x16xf32>
    %97 = math.rsqrt %96 : vector<1x16xf32>
    %98 = vector.broadcast %97 : vector<1x16xf32> to vector<8x16xf32>
    %99 = arith.mulf %94, %98 : vector<8x16xf32>
    %c0_52 = arith.constant 0 : index
    %c0_53 = arith.constant 0 : index
    %100 = vector.load %arg16[%c0_52, %c0_53] : memref<1x16xf32, #tpu.memory_space<vmem>>, vector<1x16xf32>
    %101 = vector.broadcast %100 : vector<1x16xf32> to vector<8x16xf32>
    %102 = arith.mulf %99, %101 : vector<8x16xf32>
    %c0_54 = arith.constant 0 : index
    %c0_55 = arith.constant 0 : index
    %103 = vector.load %arg17[%c0_54, %c0_55] : memref<1x16xf32, #tpu.memory_space<vmem>>, vector<1x16xf32>
    %104 = vector.broadcast %103 : vector<1x16xf32> to vector<8x16xf32>
    %105 = arith.addf %102, %104 : vector<8x16xf32>
    %cst_56 = arith.constant 0.000000e+00 : f32
    %106 = vector.broadcast %cst_56 : f32 to vector<8x16xf32>
    %107 = arith.cmpf ogt, %105, %106 : vector<8x16xf32>
    %cst_57 = arith.constant 0.00999999977 : f32
    %108 = vector.broadcast %cst_57 : f32 to vector<8x16xf32>
    %109 = arith.mulf %108, %105 : vector<8x16xf32>
    %110 = arith.select %107, %105, %109 : vector<8x16xi1>, vector<8x16xf32>
    %c0_58 = arith.constant 0 : index
    %c0_59 = arith.constant 0 : index
    %111 = vector.load %arg18[%c0_58, %c0_59] : memref<16x32xf32, #tpu.memory_space<vmem>>, vector<16x32xf32>
    %cst_60 = arith.constant dense<0.000000e+00> : vector<8x32xf32>
    %112 = tpu.matmul %110, %111, %cst_60 {dimension_numbers = #tpu.dot_dimension_numbers<[1], [0], [0], [1], [0, 0, 1, 1], [], []>} : vector<8x16xf32>, vector<16x32xf32>, vector<8x32xf32> -> vector<8x32xf32>
    %c0_61 = arith.constant 0 : index
    %c0_62 = arith.constant 0 : index
    %113 = vector.load %arg19[%c0_61, %c0_62] : memref<1x32xf32, #tpu.memory_space<vmem>>, vector<1x32xf32>
    %114 = vector.broadcast %113 : vector<1x32xf32> to vector<8x32xf32>
    %115 = arith.addf %112, %114 : vector<8x32xf32>
    %c0_63 = arith.constant 0 : index
    %c0_64 = arith.constant 0 : index
    %116 = vector.load %arg20[%c0_63, %c0_64] : memref<16x8xf32, #tpu.memory_space<vmem>>, vector<16x8xf32>
    %cst_65 = arith.constant dense<0.000000e+00> : vector<8x8xf32>
    %117 = tpu.matmul %110, %116, %cst_65 {dimension_numbers = #tpu.dot_dimension_numbers<[1], [0], [0], [1], [0, 0, 1, 1], [], []>} : vector<8x16xf32>, vector<16x8xf32>, vector<8x8xf32> -> vector<8x8xf32>
    %c0_66 = arith.constant 0 : index
    %c0_67 = arith.constant 0 : index
    %118 = vector.load %arg21[%c0_66, %c0_67] : memref<1x8xf32, #tpu.memory_space<vmem>>, vector<1x8xf32>
    %119 = vector.broadcast %118 : vector<1x8xf32> to vector<8x8xf32>
    %120 = arith.addf %117, %119 : vector<8x8xf32>
    %c0_68 = arith.constant 0 : index
    %c0_69 = arith.constant 0 : index
    %121 = vector.load %arg22[%c0_68, %c0_69] : memref<16x8xf32, #tpu.memory_space<vmem>>, vector<16x8xf32>
    %cst_70 = arith.constant dense<0.000000e+00> : vector<8x8xf32>
    %122 = tpu.matmul %110, %121, %cst_70 {dimension_numbers = #tpu.dot_dimension_numbers<[1], [0], [0], [1], [0, 0, 1, 1], [], []>} : vector<8x16xf32>, vector<16x8xf32>, vector<8x8xf32> -> vector<8x8xf32>
    %c0_71 = arith.constant 0 : index
    %c0_72 = arith.constant 0 : index
    %123 = vector.load %arg23[%c0_71, %c0_72] : memref<1x8xf32, #tpu.memory_space<vmem>>, vector<1x8xf32>
    %124 = vector.broadcast %123 : vector<1x8xf32> to vector<8x8xf32>
    %125 = arith.addf %122, %124 : vector<8x8xf32>
    %c0_73 = arith.constant 0 : index
    %c0_74 = arith.constant 0 : index
    %126 = vector.load %arg3[%c0_73, %c0_74] : memref<8x8xf32, #tpu.memory_space<vmem>>, vector<8x8xf32>
    %cst_75 = arith.constant 5.000000e-01 : f32
    %127 = vector.broadcast %cst_75 : f32 to vector<8x8xf32>
    %128 = arith.mulf %127, %125 : vector<8x8xf32>
    %129 = math.exp %128 : vector<8x8xf32>
    %130 = arith.mulf %126, %129 : vector<8x8xf32>
    %131 = arith.addf %130, %120 : vector<8x8xf32>
    %c0_76 = arith.constant 0 : index
    %c0_77 = arith.constant 0 : index
    %132 = vector.load %arg24[%c0_76, %c0_77] : memref<8x16xf32, #tpu.memory_space<vmem>>, vector<8x16xf32>
    %cst_78 = arith.constant dense<0.000000e+00> : vector<8x16xf32>
    %133 = tpu.matmul %131, %132, %cst_78 {dimension_numbers = #tpu.dot_dimension_numbers<[1], [0], [0], [1], [0, 0, 1, 1], [], []>} : vector<8x8xf32>, vector<8x16xf32>, vector<8x16xf32> -> vector<8x16xf32>
    %c0_79 = arith.constant 0 : index
    %c0_80 = arith.constant 0 : index
    %134 = vector.load %arg25[%c0_79, %c0_80] : memref<12x16xf32, #tpu.memory_space<vmem>>, vector<12x16xf32>
    %cst_81 = arith.constant dense<0.000000e+00> : vector<8x16xf32>
    %135 = tpu.matmul %2, %134, %cst_81 {dimension_numbers = #tpu.dot_dimension_numbers<[1], [0], [0], [1], [0, 0, 1, 1], [], []>} : vector<8x12xf32>, vector<12x16xf32>, vector<8x16xf32> -> vector<8x16xf32>
    %136 = arith.addf %133, %135 : vector<8x16xf32>
    %c0_82 = arith.constant 0 : index
    %c0_83 = arith.constant 0 : index
    %137 = vector.load %arg26[%c0_82, %c0_83] : memref<1x16xf32, #tpu.memory_space<vmem>>, vector<1x16xf32>
    %138 = vector.broadcast %137 : vector<1x16xf32> to vector<8x16xf32>
    %139 = arith.addf %136, %138 : vector<8x16xf32>
    %cst_84 = arith.constant dense<0.000000e+00> : vector<16xf32>
    %140 = vector.multi_reduction <add>, %139, %cst_84 [0] : vector<8x16xf32> to vector<16xf32>
    %141 = vector.shape_cast %140 : vector<16xf32> to vector<1x16xf32>
    %cst_85 = arith.constant 8.000000e+00 : f32
    %142 = vector.broadcast %cst_85 : f32 to vector<1x16xf32>
    %143 = arith.divf %141, %142 : vector<1x16xf32>
    %144 = vector.broadcast %143 : vector<1x16xf32> to vector<8x16xf32>
    %145 = arith.subf %139, %144 : vector<8x16xf32>
    %146 = arith.mulf %145, %145 : vector<8x16xf32>
    %cst_86 = arith.constant dense<0.000000e+00> : vector<16xf32>
    %147 = vector.multi_reduction <add>, %146, %cst_86 [0] : vector<8x16xf32> to vector<16xf32>
    %148 = vector.shape_cast %147 : vector<16xf32> to vector<1x16xf32>
    %cst_87 = arith.constant 8.000000e+00 : f32
    %149 = vector.broadcast %cst_87 : f32 to vector<1x16xf32>
    %150 = arith.divf %148, %149 : vector<1x16xf32>
    %151 = vector.broadcast %143 : vector<1x16xf32> to vector<8x16xf32>
    %152 = arith.subf %139, %151 : vector<8x16xf32>
    %cst_88 = arith.constant 9.99999974E-6 : f32
    %153 = vector.broadcast %cst_88 : f32 to vector<1x16xf32>
    %154 = arith.addf %150, %153 : vector<1x16xf32>
    %155 = math.rsqrt %154 : vector<1x16xf32>
    %156 = vector.broadcast %155 : vector<1x16xf32> to vector<8x16xf32>
    %157 = arith.mulf %152, %156 : vector<8x16xf32>
    %c0_89 = arith.constant 0 : index
    %c0_90 = arith.constant 0 : index
    %158 = vector.load %arg27[%c0_89, %c0_90] : memref<1x16xf32, #tpu.memory_space<vmem>>, vector<1x16xf32>
    %159 = vector.broadcast %158 : vector<1x16xf32> to vector<8x16xf32>
    %160 = arith.mulf %157, %159 : vector<8x16xf32>
    %c0_91 = arith.constant 0 : index
    %c0_92 = arith.constant 0 : index
    %161 = vector.load %arg28[%c0_91, %c0_92] : memref<1x16xf32, #tpu.memory_space<vmem>>, vector<1x16xf32>
    %162 = vector.broadcast %161 : vector<1x16xf32> to vector<8x16xf32>
    %163 = arith.addf %160, %162 : vector<8x16xf32>
    %cst_93 = arith.constant 0.000000e+00 : f32
    %164 = vector.broadcast %cst_93 : f32 to vector<8x16xf32>
    %165 = arith.cmpf ogt, %163, %164 : vector<8x16xf32>
    %cst_94 = arith.constant 0.00999999977 : f32
    %166 = vector.broadcast %cst_94 : f32 to vector<8x16xf32>
    %167 = arith.mulf %166, %163 : vector<8x16xf32>
    %168 = arith.select %165, %163, %167 : vector<8x16xi1>, vector<8x16xf32>
    %c0_95 = arith.constant 0 : index
    %c0_96 = arith.constant 0 : index
    %169 = vector.load %arg29[%c0_95, %c0_96] : memref<16x32xf32, #tpu.memory_space<vmem>>, vector<16x32xf32>
    %cst_97 = arith.constant dense<0.000000e+00> : vector<8x32xf32>
    %170 = tpu.matmul %168, %169, %cst_97 {dimension_numbers = #tpu.dot_dimension_numbers<[1], [0], [0], [1], [0, 0, 1, 1], [], []>} : vector<8x16xf32>, vector<16x32xf32>, vector<8x32xf32> -> vector<8x32xf32>
    %c0_98 = arith.constant 0 : index
    %c0_99 = arith.constant 0 : index
    %171 = vector.load %arg30[%c0_98, %c0_99] : memref<1x32xf32, #tpu.memory_space<vmem>>, vector<1x32xf32>
    %172 = vector.broadcast %171 : vector<1x32xf32> to vector<8x32xf32>
    %173 = arith.addf %170, %172 : vector<8x32xf32>
    %cst_100 = arith.constant dense<0.000000e+00> : vector<32xf32>
    %174 = vector.multi_reduction <add>, %173, %cst_100 [0] : vector<8x32xf32> to vector<32xf32>
    %175 = vector.shape_cast %174 : vector<32xf32> to vector<1x32xf32>
    %cst_101 = arith.constant 8.000000e+00 : f32
    %176 = vector.broadcast %cst_101 : f32 to vector<1x32xf32>
    %177 = arith.divf %175, %176 : vector<1x32xf32>
    %178 = vector.broadcast %177 : vector<1x32xf32> to vector<8x32xf32>
    %179 = arith.subf %173, %178 : vector<8x32xf32>
    %180 = arith.mulf %179, %179 : vector<8x32xf32>
    %cst_102 = arith.constant dense<0.000000e+00> : vector<32xf32>
    %181 = vector.multi_reduction <add>, %180, %cst_102 [0] : vector<8x32xf32> to vector<32xf32>
    %182 = vector.shape_cast %181 : vector<32xf32> to vector<1x32xf32>
    %cst_103 = arith.constant 8.000000e+00 : f32
    %183 = vector.broadcast %cst_103 : f32 to vector<1x32xf32>
    %184 = arith.divf %182, %183 : vector<1x32xf32>
    %185 = vector.broadcast %177 : vector<1x32xf32> to vector<8x32xf32>
    %186 = arith.subf %173, %185 : vector<8x32xf32>
    %cst_104 = arith.constant 9.99999974E-6 : f32
    %187 = vector.broadcast %cst_104 : f32 to vector<1x32xf32>
    %188 = arith.addf %184, %187 : vector<1x32xf32>
    %189 = math.rsqrt %188 : vector<1x32xf32>
    %190 = vector.broadcast %189 : vector<1x32xf32> to vector<8x32xf32>
    %191 = arith.mulf %186, %190 : vector<8x32xf32>
    %c0_105 = arith.constant 0 : index
    %c0_106 = arith.constant 0 : index
    %192 = vector.load %arg31[%c0_105, %c0_106] : memref<1x32xf32, #tpu.memory_space<vmem>>, vector<1x32xf32>
    %193 = vector.broadcast %192 : vector<1x32xf32> to vector<8x32xf32>
    %194 = arith.mulf %191, %193 : vector<8x32xf32>
    %c0_107 = arith.constant 0 : index
    %c0_108 = arith.constant 0 : index
    %195 = vector.load %arg32[%c0_107, %c0_108] : memref<1x32xf32, #tpu.memory_space<vmem>>, vector<1x32xf32>
    %196 = vector.broadcast %195 : vector<1x32xf32> to vector<8x32xf32>
    %197 = arith.addf %194, %196 : vector<8x32xf32>
    %cst_109 = arith.constant 0.000000e+00 : f32
    %198 = vector.broadcast %cst_109 : f32 to vector<8x32xf32>
    %199 = arith.cmpf ogt, %197, %198 : vector<8x32xf32>
    %cst_110 = arith.constant 0.00999999977 : f32
    %200 = vector.broadcast %cst_110 : f32 to vector<8x32xf32>
    %201 = arith.mulf %200, %197 : vector<8x32xf32>
    %202 = arith.select %199, %197, %201 : vector<8x32xi1>, vector<8x32xf32>
    %c0_111 = arith.constant 0 : index
    %c0_112 = arith.constant 0 : index
    %203 = vector.load %arg33[%c0_111, %c0_112] : memref<32x64xf32, #tpu.memory_space<vmem>>, vector<32x64xf32>
    %cst_113 = arith.constant dense<0.000000e+00> : vector<8x64xf32>
    %204 = tpu.matmul %202, %203, %cst_113 {dimension_numbers = #tpu.dot_dimension_numbers<[1], [0], [0], [1], [0, 0, 1, 1], [], []>} : vector<8x32xf32>, vector<32x64xf32>, vector<8x64xf32> -> vector<8x64xf32>
    %c0_114 = arith.constant 0 : index
    %c0_115 = arith.constant 0 : index
    %205 = vector.load %arg34[%c0_114, %c0_115] : memref<1x64xf32, #tpu.memory_space<vmem>>, vector<1x64xf32>
    %206 = vector.broadcast %205 : vector<1x64xf32> to vector<8x64xf32>
    %207 = arith.addf %204, %206 : vector<8x64xf32>
    %cst_116 = arith.constant dense<0.000000e+00> : vector<64xf32>
    %208 = vector.multi_reduction <add>, %207, %cst_116 [0] : vector<8x64xf32> to vector<64xf32>
    %209 = vector.shape_cast %208 : vector<64xf32> to vector<1x64xf32>
    %cst_117 = arith.constant 8.000000e+00 : f32
    %210 = vector.broadcast %cst_117 : f32 to vector<1x64xf32>
    %211 = arith.divf %209, %210 : vector<1x64xf32>
    %212 = vector.broadcast %211 : vector<1x64xf32> to vector<8x64xf32>
    %213 = arith.subf %207, %212 : vector<8x64xf32>
    %214 = arith.mulf %213, %213 : vector<8x64xf32>
    %cst_118 = arith.constant dense<0.000000e+00> : vector<64xf32>
    %215 = vector.multi_reduction <add>, %214, %cst_118 [0] : vector<8x64xf32> to vector<64xf32>
    %216 = vector.shape_cast %215 : vector<64xf32> to vector<1x64xf32>
    %cst_119 = arith.constant 8.000000e+00 : f32
    %217 = vector.broadcast %cst_119 : f32 to vector<1x64xf32>
    %218 = arith.divf %216, %217 : vector<1x64xf32>
    %219 = vector.broadcast %211 : vector<1x64xf32> to vector<8x64xf32>
    %220 = arith.subf %207, %219 : vector<8x64xf32>
    %cst_120 = arith.constant 9.99999974E-6 : f32
    %221 = vector.broadcast %cst_120 : f32 to vector<1x64xf32>
    %222 = arith.addf %218, %221 : vector<1x64xf32>
    %223 = math.rsqrt %222 : vector<1x64xf32>
    %224 = vector.broadcast %223 : vector<1x64xf32> to vector<8x64xf32>
    %225 = arith.mulf %220, %224 : vector<8x64xf32>
    %c0_121 = arith.constant 0 : index
    %c0_122 = arith.constant 0 : index
    %226 = vector.load %arg35[%c0_121, %c0_122] : memref<1x64xf32, #tpu.memory_space<vmem>>, vector<1x64xf32>
    %227 = vector.broadcast %226 : vector<1x64xf32> to vector<8x64xf32>
    %228 = arith.mulf %225, %227 : vector<8x64xf32>
    %c0_123 = arith.constant 0 : index
    %c0_124 = arith.constant 0 : index
    %229 = vector.load %arg36[%c0_123, %c0_124] : memref<1x64xf32, #tpu.memory_space<vmem>>, vector<1x64xf32>
    %230 = vector.broadcast %229 : vector<1x64xf32> to vector<8x64xf32>
    %231 = arith.addf %228, %230 : vector<8x64xf32>
    %cst_125 = arith.constant 0.000000e+00 : f32
    %232 = vector.broadcast %cst_125 : f32 to vector<8x64xf32>
    %233 = arith.cmpf ogt, %231, %232 : vector<8x64xf32>
    %cst_126 = arith.constant 0.00999999977 : f32
    %234 = vector.broadcast %cst_126 : f32 to vector<8x64xf32>
    %235 = arith.mulf %234, %231 : vector<8x64xf32>
    %236 = arith.select %233, %231, %235 : vector<8x64xi1>, vector<8x64xf32>
    %c0_127 = arith.constant 0 : index
    %c0_128 = arith.constant 0 : index
    %237 = vector.load %arg37[%c0_127, %c0_128] : memref<64x56xf32, #tpu.memory_space<vmem>>, vector<64x56xf32>
    %cst_129 = arith.constant dense<0.000000e+00> : vector<8x56xf32>
    %238 = tpu.matmul %236, %237, %cst_129 {dimension_numbers = #tpu.dot_dimension_numbers<[1], [0], [0], [1], [0, 0, 1, 1], [], []>} : vector<8x64xf32>, vector<64x56xf32>, vector<8x56xf32> -> vector<8x56xf32>
    %c0_130 = arith.constant 0 : index
    %c0_131 = arith.constant 0 : index
    %239 = vector.load %arg38[%c0_130, %c0_131] : memref<1x56xf32, #tpu.memory_space<vmem>>, vector<1x56xf32>
    %240 = vector.broadcast %239 : vector<1x56xf32> to vector<8x56xf32>
    %241 = arith.addf %238, %240 : vector<8x56xf32>
    %cst_132 = arith.constant 0.000000e+00 : f32
    %242 = vector.broadcast %cst_132 : f32 to vector<8x24xf32>
    %243 = tpu.concatenate %241, %120, %125, %115, %242 in 1 : vector<8x56xf32>, vector<8x8xf32>, vector<8x8xf32>, vector<8x32xf32>, vector<8x24xf32> -> vector<8x128xf32>
    %c0_133 = arith.constant 0 : index
    %c0_134 = arith.constant 0 : index
    %244 = vector.load %arg39[%c0_133, %c0_134] : memref<8x128xf32, #tpu.memory_space<vmem>>, vector<8x128xf32>
    tpu.vector_store %arg39[%c0_133, %c0_134], %243 {strides = array<i32>} : memref<8x128xf32, #tpu.memory_space<vmem>>, vector<8x128xf32>,
    return
  }
}

</mosaic_0001>

<llo_original>
// kernel: generator_forward.1
$region0: #{generator_forward.1}
  #allocation0 [shape = 'u32[]', space=smem, size = 0x4, offset = 0x4, fixed_abs, tag = 'smem constant byte address 0x4 - core index']
  #allocation1 [shape = 'u32[144,128]{1,0:T(1,128)}', space=vmem, size = 0x12000, scoped, tag = 'internal scratch']
  %s0 = inlined_call_operand.smem [shape: u32[40], index: -1, kind: input, shape index: {}]
  %s1 = sld [smem:[%s0]]
  %s2 = scalar_lea.smem %s0, 1
  %s3 = sld [smem:[%s2]]
  %s4 = scalar_lea.smem %s0, 2
  %s5 = sld [smem:[%s4]]
  %s6 = scalar_lea.smem %s0, 3
  %s7 = sld [smem:[%s6]]
  %s8 = scalar_lea.smem %s0, 4
  %s9 = sld [smem:[%s8]]
  %s10 = scalar_lea.smem %s0, 5
  %s11 = sld [smem:[%s10]]
  %s12 = scalar_lea.smem %s0, 6
  %s13 = sld [smem:[%s12]]
  %s14 = scalar_lea.smem %s0, 7
  %s15 = sld [smem:[%s14]]
  %s16 = scalar_lea.smem %s0, 8
  %s17 = sld [smem:[%s16]]
  %s18 = scalar_lea.smem %s0, 9
  %s19 = sld [smem:[%s18]]
  %s20 = scalar_lea.smem %s0, 10
  %s21 = sld [smem:[%s20]]
  %s22 = scalar_lea.smem %s0, 11
  %s23 = sld [smem:[%s22]]
  %s24 = scalar_lea.smem %s0, 12
  %s25 = sld [smem:[%s24]]
  %s26 = scalar_lea.smem %s0, 13
  %s27 = sld [smem:[%s26]]
  %s28 = scalar_lea.smem %s0, 14
  %s29 = sld [smem:[%s28]]
  %s30 = scalar_lea.smem %s0, 15
  %s31 = sld [smem:[%s30]]
  %s32 = scalar_lea.smem %s0, 16
  %s33 = sld [smem:[%s32]]
  %s34 = scalar_lea.smem %s0, 17
  %s35 = sld [smem:[%s34]]
  %s36 = scalar_lea.smem %s0, 18
  %s37 = sld [smem:[%s36]]
  %s38 = scalar_lea.smem %s0, 19
  %s39 = sld [smem:[%s38]]
  %s40 = scalar_lea.smem %s0, 20
  %s41 = sld [smem:[%s40]]
  %s42 = scalar_lea.smem %s0, 21
  %s43 = sld [smem:[%s42]]
  %s44 = scalar_lea.smem %s0, 22
  %s45 = sld [smem:[%s44]]
  %s46 = scalar_lea.smem %s0, 23
  %s47 = sld [smem:[%s46]]
  %s48 = scalar_lea.smem %s0, 24
  %s49 = sld [smem:[%s48]]
  %s50 = scalar_lea.smem %s0, 25
  %s51 = sld [smem:[%s50]]
  %s52 = scalar_lea.smem %s0, 26
  %s53 = sld [smem:[%s52]]
  %s54 = scalar_lea.smem %s0, 27
  %s55 = sld [smem:[%s54]]
  %s56 = scalar_lea.smem %s0, 28
  %s57 = sld [smem:[%s56]]
  %s58 = scalar_lea.smem %s0, 29
  %s59 = sld [smem:[%s58]]
  %s60 = scalar_lea.smem %s0, 30
  %s61 = sld [smem:[%s60]]
  %s62 = scalar_lea.smem %s0, 31
  %s63 = sld [smem:[%s62]]
  %s64 = scalar_lea.smem %s0, 32
  %s65 = sld [smem:[%s64]]
  %s66 = scalar_lea.smem %s0, 33
  %s67 = sld [smem:[%s66]]
  %s68 = scalar_lea.smem %s0, 34
  %s69 = sld [smem:[%s68]]
  %s70 = scalar_lea.smem %s0, 35
  %s71 = sld [smem:[%s70]]
  %s72 = scalar_lea.smem %s0, 36
  %s73 = sld [smem:[%s72]]
  %s74 = scalar_lea.smem %s0, 37
  %s75 = sld [smem:[%s74]]
  %s76 = scalar_lea.smem %s0, 38
  %s77 = sld [smem:[%s76]]
  %s78 = scalar_lea.smem %s0, 39
  %s79 = sld [smem:[%s78]]
  %s80 = sld [smem:[#allocation0]]
  $region166: #{generator_forward.1} parent=0
    _
  %s82 = ssub.s32 1, %s80
  %s83 = scalar_select 0, %s82, %s80
  // Predicated region
  $region2: #{generator_forward.1} parent=0 // pred_check
    _
  $region3: #{generator_forward.1} parent=0 // pred_check_branch
    %85 = sbr.rel (0) target = $region5
  $region4: #{generator_forward.1} parent=0 // pred_region
    _
  $region5: #{generator_forward.1} parent=0 // pred_fallthru
    _
  // Predicated region
  $region6: #{generator_forward.1} parent=0 // pred_check
    _
  $region7: #{generator_forward.1} parent=0 // pred_check_branch
    %87 = sbr.rel (0) target = $region9
  $region8: #{generator_forward.1} parent=0 // pred_region
    _
  $region9: #{generator_forward.1} parent=0 // pred_fallthru
    _
  // Predicated region
  $region10: #{generator_forward.1} parent=0 // pred_check
    _
  $region11: #{generator_forward.1} parent=0 // pred_check_branch
    %89 = sbr.rel (0) target = $region13
  $region12: #{generator_forward.1} parent=0 // pred_region
    _
  $region13: #{generator_forward.1} parent=0 // pred_fallthru
    _
  // Predicated region
  $region14: #{generator_forward.1} parent=0 // pred_check
    _
  $region15: #{generator_forward.1} parent=0 // pred_check_branch
    %91 = sbr.rel (0) target = $region17
  $region16: #{generator_forward.1} parent=0 // pred_region
    _
  $region17: #{generator_forward.1} parent=0 // pred_fallthru
    _
  // Predicated region
  $region18: #{generator_forward.1} parent=0 // pred_check
    _
  $region19: #{generator_forward.1} parent=0 // pred_check_branch
    %93 = sbr.rel (0) target = $region21
  $region20: #{generator_forward.1} parent=0 // pred_region
    _
  $region21: #{generator_forward.1} parent=0 // pred_fallthru
    _
  // Predicated region
  $region22: #{generator_forward.1} parent=0 // pred_check
    _
  $region23: #{generator_forward.1} parent=0 // pred_check_branch
    %95 = sbr.rel (0) target = $region25
  $region24: #{generator_forward.1} parent=0 // pred_region
    _
  $region25: #{generator_forward.1} parent=0 // pred_fallthru
    _
  // Predicated region
  $region26: #{generator_forward.1} parent=0 // pred_check
    _
  $region27: #{generator_forward.1} parent=0 // pred_check_branch
    %97 = sbr.rel (0) target = $region29
  $region28: #{generator_forward.1} parent=0 // pred_region
    _
  $region29: #{generator_forward.1} parent=0 // pred_fallthru
    _
  // Predicated region
  $region30: #{generator_forward.1} parent=0 // pred_check
    _
  $region31: #{generator_forward.1} parent=0 // pred_check_branch
    %99 = sbr.rel (0) target = $region33
  $region32: #{generator_forward.1} parent=0 // pred_region
    _
  $region33: #{generator_forward.1} parent=0 // pred_fallthru
    _
  // Predicated region
  $region34: #{generator_forward.1} parent=0 // pred_check
    _
  $region35: #{generator_forward.1} parent=0 // pred_check_branch
    %101 = sbr.rel (0) target = $region37
  $region36: #{generator_forward.1} parent=0 // pred_region
    _
  $region37: #{generator_forward.1} parent=0 // pred_fallthru
    _
  // Predicated region
  $region38: #{generator_forward.1} parent=0 // pred_check
    _
  $region39: #{generator_forward.1} parent=0 // pred_check_branch
    %103 = sbr.rel (0) target = $region41
  $region40: #{generator_forward.1} parent=0 // pred_region
    _
  $region41: #{generator_forward.1} parent=0 // pred_fallthru
    _
  // Predicated region
  $region42: #{generator_forward.1} parent=0 // pred_check
    _
  $region43: #{generator_forward.1} parent=0 // pred_check_branch
    %105 = sbr.rel (0) target = $region45
  $region44: #{generator_forward.1} parent=0 // pred_region
    _
  $region45: #{generator_forward.1} parent=0 // pred_fallthru
    _
  // Predicated region
  $region46: #{generator_forward.1} parent=0 // pred_check
    _
  $region47: #{generator_forward.1} parent=0 // pred_check_branch
    %107 = sbr.rel (0) target = $region49
  $region48: #{generator_forward.1} parent=0 // pred_region
    _
  $region49: #{generator_forward.1} parent=0 // pred_fallthru
    _
  // Predicated region
  $region50: #{generator_forward.1} parent=0 // pred_check
    _
  $region51: #{generator_forward.1} parent=0 // pred_check_branch
    %109 = sbr.rel (0) target = $region53
  $region52: #{generator_forward.1} parent=0 // pred_region
    _
  $region53: #{generator_forward.1} parent=0 // pred_fallthru
    _
  // Predicated region
  $region54: #{generator_forward.1} parent=0 // pred_check
    _
  $region55: #{generator_forward.1} parent=0 // pred_check_branch
    %111 = sbr.rel (0) target = $region57
  $region56: #{generator_forward.1} parent=0 // pred_region
    _
  $region57: #{generator_forward.1} parent=0 // pred_fallthru
    _
  // Predicated region
  $region58: #{generator_forward.1} parent=0 // pred_check
    _
  $region59: #{generator_forward.1} parent=0 // pred_check_branch
    %113 = sbr.rel (0) target = $region61
  $region60: #{generator_forward.1} parent=0 // pred_region
    _
  $region61: #{generator_forward.1} parent=0 // pred_fallthru
    _
  // Predicated region
  $region62: #{generator_forward.1} parent=0 // pred_check
    _
  $region63: #{generator_forward.1} parent=0 // pred_check_branch
    %115 = sbr.rel (0) target = $region65
  $region64: #{generator_forward.1} parent=0 // pred_region
    _
  $region65: #{generator_forward.1} parent=0 // pred_fallthru
    _
  // Predicated region
  $region66: #{generator_forward.1} parent=0 // pred_check
    _
  $region67: #{generator_forward.1} parent=0 // pred_check_branch
    %117 = sbr.rel (0) target = $region69
  $region68: #{generator_forward.1} parent=0 // pred_region
    _
  $region69: #{generator_forward.1} parent=0 // pred_fallthru
    _
  // Predicated region
  $region70: #{generator_forward.1} parent=0 // pred_check
    _
  $region71: #{generator_forward.1} parent=0 // pred_check_branch
    %119 = sbr.rel (0) target = $region73
  $region72: #{generator_forward.1} parent=0 // pred_region
    _
  $region73: #{generator_forward.1} parent=0 // pred_fallthru
    _
  // Predicated region
  $region74: #{generator_forward.1} parent=0 // pred_check
    _
  $region75: #{generator_forward.1} parent=0 // pred_check_branch
    %121 = sbr.rel (0) target = $region77
  $region76: #{generator_forward.1} parent=0 // pred_region
    _
  $region77: #{generator_forward.1} parent=0 // pred_fallthru
    _
  // Predicated region
  $region78: #{generator_forward.1} parent=0 // pred_check
    _
  $region79: #{generator_forward.1} parent=0 // pred_check_branch
    %123 = sbr.rel (0) target = $region81
  $region80: #{generator_forward.1} parent=0 // pred_region
    _
  $region81: #{generator_forward.1} parent=0 // pred_fallthru
    _
  // Predicated region
  $region82: #{generator_forward.1} parent=0 // pred_check
    _
  $region83: #{generator_forward.1} parent=0 // pred_check_branch
    %125 = sbr.rel (0) target = $region85
  $region84: #{generator_forward.1} parent=0 // pred_region
    _
  $region85: #{generator_forward.1} parent=0 // pred_fallthru
    _
  // Predicated region
  $region86: #{generator_forward.1} parent=0 // pred_check
    _
  $region87: #{generator_forward.1} parent=0 // pred_check_branch
    %127 = sbr.rel (0) target = $region89
  $region88: #{generator_forward.1} parent=0 // pred_region
    _
  $region89: #{generator_forward.1} parent=0 // pred_fallthru
    _
  // Predicated region
  $region90: #{generator_forward.1} parent=0 // pred_check
    _
  $region91: #{generator_forward.1} parent=0 // pred_check_branch
    %129 = sbr.rel (0) target = $region93
  $region92: #{generator_forward.1} parent=0 // pred_region
    _
  $region93: #{generator_forward.1} parent=0 // pred_fallthru
    _
  // Predicated region
  $region94: #{generator_forward.1} parent=0 // pred_check
    _
  $region95: #{generator_forward.1} parent=0 // pred_check_branch
    %131 = sbr.rel (0) target = $region97
  $region96: #{generator_forward.1} parent=0 // pred_region
    _
  $region97: #{generator_forward.1} parent=0 // pred_fallthru
    _
  // Predicated region
  $region98: #{generator_forward.1} parent=0 // pred_check
    _
  $region99: #{generator_forward.1} parent=0 // pred_check_branch
    %133 = sbr.rel (0) target = $region101
  $region100: #{generator_forward.1} parent=0 // pred_region
    _
  $region101: #{generator_forward.1} parent=0 // pred_fallthru
    _
  // Predicated region
  $region102: #{generator_forward.1} parent=0 // pred_check
    _
  $region103: #{generator_forward.1} parent=0 // pred_check_branch
    %135 = sbr.rel (0) target = $region105
  $region104: #{generator_forward.1} parent=0 // pred_region
    _
  $region105: #{generator_forward.1} parent=0 // pred_fallthru
    _
  // Predicated region
  $region106: #{generator_forward.1} parent=0 // pred_check
    _
  $region107: #{generator_forward.1} parent=0 // pred_check_branch
    %137 = sbr.rel (0) target = $region109
  $region108: #{generator_forward.1} parent=0 // pred_region
    _
  $region109: #{generator_forward.1} parent=0 // pred_fallthru
    _
  // Predicated region
  $region110: #{generator_forward.1} parent=0 // pred_check
    _
  $region111: #{generator_forward.1} parent=0 // pred_check_branch
    %139 = sbr.rel (0) target = $region113
  $region112: #{generator_forward.1} parent=0 // pred_region
    _
  $region113: #{generator_forward.1} parent=0 // pred_fallthru
    _
  // Predicated region
  $region114: #{generator_forward.1} parent=0 // pred_check
    _
  $region115: #{generator_forward.1} parent=0 // pred_check_branch
    %141 = sbr.rel (0) target = $region117
  $region116: #{generator_forward.1} parent=0 // pred_region
    _
  $region117: #{generator_forward.1} parent=0 // pred_fallthru
    _
  // Predicated region
  $region118: #{generator_forward.1} parent=0 // pred_check
    _
  $region119: #{generator_forward.1} parent=0 // pred_check_branch
    %143 = sbr.rel (0) target = $region121
  $region120: #{generator_forward.1} parent=0 // pred_region
    _
  $region121: #{generator_forward.1} parent=0 // pred_fallthru
    _
  // Predicated region
  $region122: #{generator_forward.1} parent=0 // pred_check
    _
  $region123: #{generator_forward.1} parent=0 // pred_check_branch
    %145 = sbr.rel (0) target = $region125
  $region124: #{generator_forward.1} parent=0 // pred_region
    _
  $region125: #{generator_forward.1} parent=0 // pred_fallthru
    _
  // Predicated region
  $region126: #{generator_forward.1} parent=0 // pred_check
    _
  $region127: #{generator_forward.1} parent=0 // pred_check_branch
    %147 = sbr.rel (0) target = $region129
  $region128: #{generator_forward.1} parent=0 // pred_region
    _
  $region129: #{generator_forward.1} parent=0 // pred_fallthru
    _
  // Predicated region
  $region130: #{generator_forward.1} parent=0 // pred_check
    _
  $region131: #{generator_forward.1} parent=0 // pred_check_branch
    %149 = sbr.rel (0) target = $region133
  $region132: #{generator_forward.1} parent=0 // pred_region
    _
  $region133: #{generator_forward.1} parent=0 // pred_fallthru
    _
  // Predicated region
  $region134: #{generator_forward.1} parent=0 // pred_check
    _
  $region135: #{generator_forward.1} parent=0 // pred_check_branch
    %151 = sbr.rel (0) target = $region137
  $region136: #{generator_forward.1} parent=0 // pred_region
    _
  $region137: #{generator_forward.1} parent=0 // pred_fallthru
    _
  // Predicated region
  $region138: #{generator_forward.1} parent=0 // pred_check
    _
  $region139: #{generator_forward.1} parent=0 // pred_check_branch
    %153 = sbr.rel (0) target = $region141
  $region140: #{generator_forward.1} parent=0 // pred_region
    _
  $region141: #{generator_forward.1} parent=0 // pred_fallthru
    _
  // Predicated region
  $region142: #{generator_forward.1} parent=0 // pred_check
    _
  $region143: #{generator_forward.1} parent=0 // pred_check_branch
    %155 = sbr.rel (0) target = $region145
  $region144: #{generator_forward.1} parent=0 // pred_region
    _
  $region145: #{generator_forward.1} parent=0 // pred_fallthru
    _
  // Predicated region
  $region146: #{generator_forward.1} parent=0 // pred_check
    _
  $region147: #{generator_forward.1} parent=0 // pred_check_branch
    %157 = sbr.rel (0) target = $region149
  $region148: #{generator_forward.1} parent=0 // pred_region
    _
  $region149: #{generator_forward.1} parent=0 // pred_fallthru
    _
  // Predicated region
  $region150: #{generator_forward.1} parent=0 // pred_check
    _
  $region151: #{generator_forward.1} parent=0 // pred_check_branch
    %159 = sbr.rel (0) target = $region153
  $region152: #{generator_forward.1} parent=0 // pred_region
    _
  $region153: #{generator_forward.1} parent=0 // pred_fallthru
    _
  // Predicated region
  $region154: #{generator_forward.1} parent=0 // pred_check
    _
  $region155: #{generator_forward.1} parent=0 // pred_check_branch
    %161 = sbr.rel (0) target = $region157
  $region156: #{generator_forward.1} parent=0 // pred_region
    _
  $region157: #{generator_forward.1} parent=0 // pred_fallthru
    _
  %v162 = vld [vmem:[%s1] sm:$0xff]
  %v163 = vld [vmem:[%s3] sm:$0xff]
  %v164 = vld [vmem:[%s5] sm:$0xff]
  %v165 = vld [vmem:[%s9] sm:$0xff]
  %v166 = vld [vmem:[%s9 + $0x8] sm:$0xff]
  %v167 = vld [vmem:[%s9 + $0x10] sm:$0xff]
  %v168 = vld [vmem:[%s9 + $0x18] sm:$0xff]
  %v169 = vld [vmem:[%s11] sm:$0xff]
  %v170 = vld [vmem:[%s11 + $0x8] sm:$0xff]
  %v171 = vld [vmem:[%s11 + $0x10] sm:$0xff]
  %vm172 = vcmask 195584
  %v174 = vsel %vm172, %v163, 0
  %176 = vmatprep.subr.mxu0 0.0
  %177 = vmatpush1.msra.mxu0 %v169
  %178 = vmatprep.subr.mxu0 0.0
  %179 = vmatpush1.msra.mxu0 %v170
  %180 = vmatprep.subr.mxu0 0.0
  %181 = vmatpush1.msra.mxu0 %v171
  %182 = vmatprep.subr.mxu0 0.0
  %183 = vmatpush1.msra.mxu0 0.0
  %184 = vmatprep.subr.mxu0 0.0
  %185 = vmatpush1.msra.mxu0 0.0
  %186 = vmatprep.subr.mxu0 0.0
  %187 = vmatpush1.msra.mxu0 0.0
  %188 = vmatprep.subr.mxu0 0.0
  %189 = vmatpush1.msra.mxu0 0.0
  %190 = vmatprep.subr.mxu0 0.0
  %191 = vmatpush1.msra.mxu0 0.0
  %192 = vmatprep.subr.mxu0 0.0
  %193 = vmatpush1.msra.mxu0 0.0
  %194 = vmatprep.subr.mxu0 0.0
  %195 = vmatpush1.msra.mxu0 0.0
  %196 = vmatprep.subr.mxu0 0.0
  %197 = vmatpush1.msra.mxu0 0.0
  %198 = vmatprep.subr.mxu0 0.0
  %199 = vmatpush1.msra.mxu0 0.0
  %200 = vmatprep.subr.mxu0 0.0
  %201 = vmatpush1.msra.mxu0 0.0
  %202 = vmatprep.subr.mxu0 0.0
  %203 = vmatpush1.msra.mxu0 0.0
  %204 = vmatprep.subr.mxu0 0.0
  %205 = vmatpush1.msra.mxu0 0.0
  %206 = vmatprep.subr.mxu0 0.0
  %207 = vmatpush1.msra.mxu0 0.0
  %208 = vmatprep.subr.mxu0 0.0
  %209 = vmatpush1.msra.mxu0 0.0
  %210 = vmatprep.subr.mxu0 0.0
  %211 = vmatpush1.msra.mxu0 0.0
  %212 = vmatprep.subr.mxu0 0.0
  %213 = vmatpush1.msra.mxu0 0.0
  %214 = vmatprep.subr.mxu0 0.0
  %215 = vmatpush1.msra.mxu0 0.0
  %216 = vmatprep.subr.mxu0 0.0
  %217 = vmatpush1.msra.mxu0 0.0
  %218 = vmatprep.subr.mxu0 0.0
  %219 = vmatpush1.msra.mxu0 0.0
  %220 = vmatprep.subr.mxu0 0.0
  %221 = vmatpush1.msra.mxu0 0.0
  %222 = vmatprep.subr.mxu0 0.0
  %223 = vmatpush1.msra.mxu0 0.0
  %224 = vmatprep.subr.mxu0 0.0
  %225 = vmatpush1.msra.mxu0 0.0
  %226 = vmatprep.subr.mxu0 0.0
  %227 = vmatpush1.msra.mxu0 0.0
  %228 = vmatprep.subr.mxu0 0.0
  %229 = vmatpush1.msra.mxu0 0.0
  %230 = vmatprep.subr.mxu0 0.0
  %231 = vmatpush1.msra.mxu0 0.0
  %232 = vmatprep.subr.mxu0 0.0
  %233 = vmatpush1.msra.mxu0 0.0
  %234 = vmatprep.subr.mxu0 0.0
  %235 = vmatpush1.msra.mxu0 0.0
  %236 = vmatprep.subr.mxu0 0.0
  %237 = vmatpush1.msra.mxu0 0.0
  %238 = vmatprep.subr.mxu0 0.0
  %239 = vmatpush1.msra.mxu0 0.0
  %240 = vmatprep.mubr.f32.mxu0 0.0
  %241 = vmatmul.mubr.f32.gmra.mrb[0].mxu0 %v174
  %v242 = vpop.f32.mrb[0].mxu0
  %v243 = vadd.f32 0.0, %v242
  %v244 = vpop.f32.mrb[0].mxu0
  %245 = vdwg.mxu0
  %vm246 = vcmask 261120
  %v248 = vsel %vm246, %v162, 0
  %250 = vmatprep.subr.mxu0 0.0
  %251 = vmatpush1.msra.mxu0 %v165
  %252 = vmatprep.subr.mxu0 0.0
  %253 = vmatpush1.msra.mxu0 %v166
  %254 = vmatprep.subr.mxu0 0.0
  %255 = vmatpush1.msra.mxu0 %v167
  %256 = vmatprep.subr.mxu0 0.0
  %257 = vmatpush1.msra.mxu0 %v168
  %258 = vmatprep.subr.mxu0 0.0
  %259 = vmatpush1.msra.mxu0 0.0
  %260 = vmatprep.subr.mxu0 0.0
  %261 = vmatpush1.msra.mxu0 0.0
  %262 = vmatprep.subr.mxu0 0.0
  %263 = vmatpush1.msra.mxu0 0.0
  %264 = vmatprep.subr.mxu0 0.0
  %265 = vmatpush1.msra.mxu0 0.0
  %266 = vmatprep.subr.mxu0 0.0
  %267 = vmatpush1.msra.mxu0 0.0
  %268 = vmatprep.subr.mxu0 0.0
  %269 = vmatpush1.msra.mxu0 0.0
  %270 = vmatprep.subr.mxu0 0.0
  %271 = vmatpush1.msra.mxu0 0.0
  %272 = vmatprep.subr.mxu0 0.0
  %273 = vmatpush1.msra.mxu0 0.0
  %274 = vmatprep.subr.mxu0 0.0
  %275 = vmatpush1.msra.mxu0 0.0
  %276 = vmatprep.subr.mxu0 0.0
  %277 = vmatpush1.msra.mxu0 0.0
  %278 = vmatprep.subr.mxu0 0.0
  %279 = vmatpush1.msra.mxu0 0.0
  %280 = vmatprep.subr.mxu0 0.0
  %281 = vmatpush1.msra.mxu0 0.0
  %282 = vmatprep.subr.mxu0 0.0
  %283 = vmatpush1.msra.mxu0 0.0
  %284 = vmatprep.subr.mxu0 0.0
  %285 = vmatpush1.msra.mxu0 0.0
  %286 = vmatprep.subr.mxu0 0.0
  %287 = vmatpush1.msra.mxu0 0.0
  %288 = vmatprep.subr.mxu0 0.0
  %289 = vmatpush1.msra.mxu0 0.0
  %290 = vmatprep.subr.mxu0 0.0
  %291 = vmatpush1.msra.mxu0 0.0
  %292 = vmatprep.subr.mxu0 0.0
  %293 = vmatpush1.msra.mxu0 0.0
  %294 = vmatprep.subr.mxu0 0.0
  %295 = vmatpush1.msra.mxu0 0.0
  %296 = vmatprep.subr.mxu0 0.0
  %297 = vmatpush1.msra.mxu0 0.0
  %298 = vmatprep.subr.mxu0 0.0
  %299 = vmatpush1.msra.mxu0 0.0
  %300 = vmatprep.subr.mxu0 0.0
  %301 = vmatpush1.msra.mxu0 0.0
  %302 = vmatprep.subr.mxu0 0.0
  %303 = vmatpush1.msra.mxu0 0.0
  %304 = vmatprep.subr.mxu0 0.0
  %305 = vmatpush1.msra.mxu0 0.0
  %306 = vmatprep.subr.mxu0 0.0
  %307 = vmatpush1.msra.mxu0 0.0
  %308 = vmatprep.subr.mxu0 0.0
  %309 = vmatpush1.msra.mxu0 0.0
  %310 = vmatprep.subr.mxu0 0.0
  %311 = vmatpush1.msra.mxu0 0.0
  %312 = vmatprep.subr.mxu0 0.0
  %313 = vmatpush1.msra.mxu0 0.0
  %314 = vmatprep.mubr.f32.mxu0 0.0
  %315 = vmatmul.mubr.f32.gmra.mrb[0].mxu0 %v248
  %v316 = vpop.f32.mrb[0].mxu0
  %v317 = vadd.f32 %v243, %v316
  %v318 = vpop.f32.mrb[0].mxu0
  %319 = vdwg.mxu0
  %v320 = vld [vmem:[%s13] sm:$0xff]
  %v321 = vld [vmem:[%s13 + $0x8] sm:$0xf]
  %vm322 = vcmask 97280
  %v324 = vsel %vm322, %v164, 0
  %vm326 = vcmask 1043456
  %v328 = vsel %vm326, %v321, 0
  %330 = vmatprep.subr.mxu0 0.0
  %331 = vmatpush1.msra.mxu0 %v320
  %332 = vmatprep.subr.mxu0 0.0
  %333 = vmatpush1.msra.mxu0 %v328
  %334 = vmatprep.subr.mxu0 0.0
  %335 = vmatpush1.msra.mxu0 0.0
  %336 = vmatprep.subr.mxu0 0.0
  %337 = vmatpush1.msra.mxu0 0.0
  %338 = vmatprep.subr.mxu0 0.0
  %339 = vmatpush1.msra.mxu0 0.0
  %340 = vmatprep.subr.mxu0 0.0
  %341 = vmatpush1.msra.mxu0 0.0
  %342 = vmatprep.subr.mxu0 0.0
  %343 = vmatpush1.msra.mxu0 0.0
  %344 = vmatprep.subr.mxu0 0.0
  %345 = vmatpush1.msra.mxu0 0.0
  %346 = vmatprep.subr.mxu0 0.0
  %347 = vmatpush1.msra.mxu0 0.0
  %348 = vmatprep.subr.mxu0 0.0
  %349 = vmatpush1.msra.mxu0 0.0
  %350 = vmatprep.subr.mxu0 0.0
  %351 = vmatpush1.msra.mxu0 0.0
  %352 = vmatprep.subr.mxu0 0.0
  %353 = vmatpush1.msra.mxu0 0.0
  %354 = vmatprep.subr.mxu0 0.0
  %355 = vmatpush1.msra.mxu0 0.0
  %356 = vmatprep.subr.mxu0 0.0
  %357 = vmatpush1.msra.mxu0 0.0
  %358 = vmatprep.subr.mxu0 0.0
  %359 = vmatpush1.msra.mxu0 0.0
  %360 = vmatprep.subr.mxu0 0.0
  %361 = vmatpush1.msra.mxu0 0.0
  %362 = vmatprep.subr.mxu0 0.0
  %363 = vmatpush1.msra.mxu0 0.0
  %364 = vmatprep.subr.mxu0 0.0
  %365 = vmatpush1.msra.mxu0 0.0
  %366 = vmatprep.subr.mxu0 0.0
  %367 = vmatpush1.msra.mxu0 0.0
  %368 = vmatprep.subr.mxu0 0.0
  %369 = vmatpush1.msra.mxu0 0.0
  %370 = vmatprep.subr.mxu0 0.0
  %371 = vmatpush1.msra.mxu0 0.0
  %372 = vmatprep.subr.mxu0 0.0
  %373 = vmatpush1.msra.mxu0 0.0
  %374 = vmatprep.subr.mxu0 0.0
  %375 = vmatpush1.msra.mxu0 0.0
  %376 = vmatprep.subr.mxu0 0.0
  %377 = vmatpush1.msra.mxu0 0.0
  %378 = vmatprep.subr.mxu0 0.0
  %379 = vmatpush1.msra.mxu0 0.0
  %380 = vmatprep.subr.mxu0 0.0
  %381 = vmatpush1.msra.mxu0 0.0
  %382 = vmatprep.subr.mxu0 0.0
  %383 = vmatpush1.msra.mxu0 0.0
  %384 = vmatprep.subr.mxu0 0.0
  %385 = vmatpush1.msra.mxu0 0.0
  %386 = vmatprep.subr.mxu0 0.0
  %387 = vmatpush1.msra.mxu0 0.0
  %388 = vmatprep.subr.mxu0 0.0
  %389 = vmatpush1.msra.mxu0 0.0
  %390 = vmatprep.subr.mxu0 0.0
  %391 = vmatpush1.msra.mxu0 0.0
  %392 = vmatprep.subr.mxu0 0.0
  %393 = vmatpush1.msra.mxu0 0.0
  %394 = vmatprep.mubr.f32.mxu0 0.0
  %395 = vmatmul.mubr.f32.gmra.mrb[0].mxu0 %v324
  %v396 = vpop.f32.mrb[0].mxu0
  %v397 = vadd.f32 0.0, %v396
  %v398 = vpop.f32.mrb[0].mxu0
  %399 = vdwg.mxu0
  %v400 = vadd.f32 %v317, %v397
  %v401 = vld [vmem:[%s15] sm:$0x1]
  %v403 = vlaneseq
  %v404 = vshrl.u32 %v403, 7
  %v405 = vsub.s32 0, %v404
  %v406 = vrot.slane %v401, %v405
  %v408 = vadd.f32 %v400, %v406
  %vm409 = vcmask 523264
  %v410 = vsel %vm409, %v408, 0.0
  %v411 = vrot.slane %v410, 4
  %v412 = vadd.f32 %v410, %v411
  %v413 = vrot.slane %v412, 2
  %v414 = vadd.f32 %v412, %v413
  %v415 = vrot.slane %v414, 1
  %v416 = vadd.f32 %v414, %v415
  %v417 = vrcp.pop 8.0
  %v418 = vmul.f32 %v416, %v417
  %v419 = vsub.f32 %v408, %v418
  %v420 = vmul.f32 %v419, %v419
  %v421 = vsel %vm409, %v420, 0.0
  %v422 = vrot.slane %v421, 4
  %v423 = vadd.f32 %v421, %v422
  %v424 = vrot.slane %v423, 2
  %v425 = vadd.f32 %v423, %v424
  %v426 = vrot.slane %v425, 1
  %v427 = vadd.f32 %v425, %v426
  %v428 = vmul.f32 %v427, %v417
  %v429 = vadd.f32 %v428, 1e-05
  %v430 = vrsqrt.pop %v429
  %v431 = vmul.f32 %v419, %v430
  %v432 = vld [vmem:[%s17] sm:$0x1]
  %v434 = vlaneseq
  %v435 = vshrl.u32 %v434, 7
  %v436 = vsub.s32 0, %v435
  %v437 = vrot.slane %v432, %v436
  %v439 = vmul.f32 %v431, %v437
  %v440 = vld [vmem:[%s19] sm:$0x1]
  %v442 = vlaneseq
  %v443 = vshrl.u32 %v442, 7
  %v444 = vsub.s32 0, %v443
  %v445 = vrot.slane %v440, %v444
  %v447 = vadd.f32 %v439, %v445
  %vm448 = vcmp.gt.f32.partialorder %v447, 0.0
  %v449 = vmul.f32 %v447, 0.01
  %v450 = vsel %vm448, %v447, %v449
  %v451 = vld [vmem:[%s21] sm:$0xff]
  %v452 = vld [vmem:[%s21 + $0x8] sm:$0xff]
  %v453 = vld [vmem:[%s21 + $0x10] sm:$0xff]
  %v454 = vld [vmem:[%s21 + $0x18] sm:$0xff]
  %v455 = vld [vmem:[%s21 + $0x20] sm:$0xff]
  %v456 = vld [vmem:[%s21 + $0x28] sm:$0xff]
  %v457 = vld [vmem:[%s21 + $0x30] sm:$0xff]
  %v458 = vld [vmem:[%s21 + $0x38] sm:$0xff]
  %v459 = vld [vmem:[%s23] sm:$0x1]
  %v461 = vlaneseq
  %v462 = vshrl.u32 %v461, 7
  %v463 = vsub.s32 0, %v462
  %v464 = vrot.slane %v459, %v463
  %v467 = vsel %vm409, %v450, 0
  %469 = vmatprep.subr.mxu0 0.0
  %470 = vmatpush1.msra.mxu0 %v451
  %471 = vmatprep.subr.mxu0 0.0
  %472 = vmatpush1.msra.mxu0 %v452
  %473 = vmatprep.subr.mxu0 0.0
  %474 = vmatpush1.msra.mxu0 %v453
  %475 = vmatprep.subr.mxu0 0.0
  %476 = vmatpush1.msra.mxu0 %v454
  %477 = vmatprep.subr.mxu0 0.0
  %478 = vmatpush1.msra.mxu0 %v455
  %479 = vmatprep.subr.mxu0 0.0
  %480 = vmatpush1.msra.mxu0 %v456
  %481 = vmatprep.subr.mxu0 0.0
  %482 = vmatpush1.msra.mxu0 %v457
  %483 = vmatprep.subr.mxu0 0.0
  %484 = vmatpush1.msra.mxu0 %v458
  %485 = vmatprep.subr.mxu0 0.0
  %486 = vmatpush1.msra.mxu0 0.0
  %487 = vmatprep.subr.mxu0 0.0
  %488 = vmatpush1.msra.mxu0 0.0
  %489 = vmatprep.subr.mxu0 0.0
  %490 = vmatpush1.msra.mxu0 0.0
  %491 = vmatprep.subr.mxu0 0.0
  %492 = vmatpush1.msra.mxu0 0.0
  %493 = vmatprep.subr.mxu0 0.0
  %494 = vmatpush1.msra.mxu0 0.0
  %495 = vmatprep.subr.mxu0 0.0
  %496 = vmatpush1.msra.mxu0 0.0
  %497 = vmatprep.subr.mxu0 0.0
  %498 = vmatpush1.msra.mxu0 0.0
  %499 = vmatprep.subr.mxu0 0.0
  %500 = vmatpush1.msra.mxu0 0.0
  %501 = vmatprep.subr.mxu0 0.0
  %502 = vmatpush1.msra.mxu0 0.0
  %503 = vmatprep.subr.mxu0 0.0
  %504 = vmatpush1.msra.mxu0 0.0
  %505 = vmatprep.subr.mxu0 0.0
  %506 = vmatpush1.msra.mxu0 0.0
  %507 = vmatprep.subr.mxu0 0.0
  %508 = vmatpush1.msra.mxu0 0.0
  %509 = vmatprep.subr.mxu0 0.0
  %510 = vmatpush1.msra.mxu0 0.0
  %511 = vmatprep.subr.mxu0 0.0
  %512 = vmatpush1.msra.mxu0 0.0
  %513 = vmatprep.subr.mxu0 0.0
  %514 = vmatpush1.msra.mxu0 0.0
  %515 = vmatprep.subr.mxu0 0.0
  %516 = vmatpush1.msra.mxu0 0.0
  %517 = vmatprep.subr.mxu0 0.0
  %518 = vmatpush1.msra.mxu0 0.0
  %519 = vmatprep.subr.mxu0 0.0
  %520 = vmatpush1.msra.mxu0 0.0
  %521 = vmatprep.subr.mxu0 0.0
  %522 = vmatpush1.msra.mxu0 0.0
  %523 = vmatprep.subr.mxu0 0.0
  %524 = vmatpush1.msra.mxu0 0.0
  %525 = vmatprep.subr.mxu0 0.0
  %526 = vmatpush1.msra.mxu0 0.0
  %527 = vmatprep.subr.mxu0 0.0
  %528 = vmatpush1.msra.mxu0 0.0
  %529 = vmatprep.subr.mxu0 0.0
  %530 = vmatpush1.msra.mxu0 0.0
  %531 = vmatprep.subr.mxu0 0.0
  %532 = vmatpush1.msra.mxu0 0.0
  %533 = vmatprep.mubr.f32.mxu0 0.0
  %534 = vmatmul.mubr.f32.gmra.mrb[0].mxu0 %v467
  %v535 = vpop.f32.mrb[0].mxu0
  %v536 = vadd.f32 %v464, %v535
  %v537 = vpop.f32.mrb[0].mxu0
  %538 = vdwg.mxu0
  %v539 = vsel %vm246, %v536, 0.0
  %v540 = vrot.slane %v539, 4
  %v541 = vadd.f32 %v539, %v540
  %v542 = vrot.slane %v541, 2
  %v543 = vadd.f32 %v541, %v542
  %v544 = vrot.slane %v543, 1
  %v545 = vadd.f32 %v543, %v544
  %v546 = vmul.f32 %v545, %v417
  %v547 = vsub.f32 %v536, %v546
  %v548 = vmul.f32 %v547, %v547
  %v549 = vsel %vm246, %v548, 0.0
  %v550 = vrot.slane %v549, 4
  %v551 = vadd.f32 %v549, %v550
  %v552 = vrot.slane %v551, 2
  %v553 = vadd.f32 %v551, %v552
  %v554 = vrot.slane %v553, 1
  %v555 = vadd.f32 %v553, %v554
  %v556 = vmul.f32 %v555, %v417
  %v557 = vadd.f32 %v556, 1e-05
  %v558 = vrsqrt.pop %v557
  %v559 = vmul.f32 %v547, %v558
  %v560 = vld [vmem:[%s25] sm:$0x1]
  %v562 = vlaneseq
  %v563 = vshrl.u32 %v562, 7
  %v564 = vsub.s32 0, %v563
  %v565 = vrot.slane %v560, %v564
  %v567 = vmul.f32 %v559, %v565
  %v568 = vld [vmem:[%s27] sm:$0x1]
  %v570 = vlaneseq
  %v571 = vshrl.u32 %v570, 7
  %v572 = vsub.s32 0, %v571
  %v573 = vrot.slane %v568, %v572
  %v575 = vadd.f32 %v567, %v573
  %vm576 = vcmp.gt.f32.partialorder %v575, 0.0
  %v577 = vmul.f32 %v575, 0.01
  %v578 = vsel %vm576, %v575, %v577
  %v579 = vld [vmem:[%s29] sm:$0xff]
  %v580 = vld [vmem:[%s29 + $0x8] sm:$0xff]
  %v581 = vld [vmem:[%s29 + $0x10] sm:$0xff]
  %v582 = vld [vmem:[%s29 + $0x18] sm:$0xff]
  %v583 = vld [vmem:[%s31] sm:$0x1]
  %v585 = vlaneseq
  %v586 = vshrl.u32 %v585, 7
  %v587 = vsub.s32 0, %v586
  %v588 = vrot.slane %v583, %v587
  %v591 = vsel %vm246, %v578, 0
  %593 = vmatprep.subr.mxu0 0.0
  %594 = vmatpush1.msra.mxu0 %v579
  %595 = vmatprep.subr.mxu0 0.0
  %596 = vmatpush1.msra.mxu0 %v580
  %597 = vmatprep.subr.mxu0 0.0
  %598 = vmatpush1.msra.mxu0 %v581
  %599 = vmatprep.subr.mxu0 0.0
  %600 = vmatpush1.msra.mxu0 %v582
  %601 = vmatprep.subr.mxu0 0.0
  %602 = vmatpush1.msra.mxu0 0.0
  %603 = vmatprep.subr.mxu0 0.0
  %604 = vmatpush1.msra.mxu0 0.0
  %605 = vmatprep.subr.mxu0 0.0
  %606 = vmatpush1.msra.mxu0 0.0
  %607 = vmatprep.subr.mxu0 0.0
  %608 = vmatpush1.msra.mxu0 0.0
  %609 = vmatprep.subr.mxu0 0.0
  %610 = vmatpush1.msra.mxu0 0.0
  %611 = vmatprep.subr.mxu0 0.0
  %612 = vmatpush1.msra.mxu0 0.0
  %613 = vmatprep.subr.mxu0 0.0
  %614 = vmatpush1.msra.mxu0 0.0
  %615 = vmatprep.subr.mxu0 0.0
  %616 = vmatpush1.msra.mxu0 0.0
  %617 = vmatprep.subr.mxu0 0.0
  %618 = vmatpush1.msra.mxu0 0.0
  %619 = vmatprep.subr.mxu0 0.0
  %620 = vmatpush1.msra.mxu0 0.0
  %621 = vmatprep.subr.mxu0 0.0
  %622 = vmatpush1.msra.mxu0 0.0
  %623 = vmatprep.subr.mxu0 0.0
  %624 = vmatpush1.msra.mxu0 0.0
  %625 = vmatprep.subr.mxu0 0.0
  %626 = vmatpush1.msra.mxu0 0.0
  %627 = vmatprep.subr.mxu0 0.0
  %628 = vmatpush1.msra.mxu0 0.0
  %629 = vmatprep.subr.mxu0 0.0
  %630 = vmatpush1.msra.mxu0 0.0
  %631 = vmatprep.subr.mxu0 0.0
  %632 = vmatpush1.msra.mxu0 0.0
  %633 = vmatprep.subr.mxu0 0.0
  %634 = vmatpush1.msra.mxu0 0.0
  %635 = vmatprep.subr.mxu0 0.0
  %636 = vmatpush1.msra.mxu0 0.0
  %637 = vmatprep.subr.mxu0 0.0
  %638 = vmatpush1.msra.mxu0 0.0
  %639 = vmatprep.subr.mxu0 0.0
  %640 = vmatpush1.msra.mxu0 0.0
  %641 = vmatprep.subr.mxu0 0.0
  %642 = vmatpush1.msra.mxu0 0.0
  %643 = vmatprep.subr.mxu0 0.0
  %644 = vmatpush1.msra.mxu0 0.0
  %645 = vmatprep.subr.mxu0 0.0
  %646 = vmatpush1.msra.mxu0 0.0
  %647 = vmatprep.subr.mxu0 0.0
  %648 = vmatpush1.msra.mxu0 0.0
  %649 = vmatprep.subr.mxu0 0.0
  %650 = vmatpush1.msra.mxu0 0.0
  %651 = vmatprep.subr.mxu0 0.0
  %652 = vmatpush1.msra.mxu0 0.0
  %653 = vmatprep.subr.mxu0 0.0
  %654 = vmatpush1.msra.mxu0 0.0
  %655 = vmatprep.subr.mxu0 0.0
  %656 = vmatpush1.msra.mxu0 0.0
  %657 = vmatprep.mubr.f32.mxu0 0.0
  %658 = vmatmul.mubr.f32.gmra.mrb[0].mxu0 %v591
  %v659 = vpop.f32.mrb[0].mxu0
  %v660 = vadd.f32 %v588, %v659
  %v661 = vpop.f32.mrb[0].mxu0
  %662 = vdwg.mxu0
  %vm663 = vcmask 130048
  %v664 = vsel %vm663, %v660, 0.0
  %v665 = vrot.slane %v664, 4
  %v666 = vadd.f32 %v664, %v665
  %v667 = vrot.slane %v666, 2
  %v668 = vadd.f32 %v666, %v667
  %v669 = vrot.slane %v668, 1
  %v670 = vadd.f32 %v668, %v669
  %v671 = vmul.f32 %v670, %v417
  %v672 = vsub.f32 %v660, %v671
  %v673 = vmul.f32 %v672, %v672
  %v674 = vsel %vm663, %v673, 0.0
  %v675 = vrot.slane %v674, 4
  %v676 = vadd.f32 %v674, %v675
  %v677 = vrot.slane %v676, 2
  %v678 = vadd.f32 %v676, %v677
  %v679 = vrot.slane %v678, 1
  %v680 = vadd.f32 %v678, %v679
  %v681 = vmul.f32 %v680, %v417
  %v682 = vadd.f32 %v681, 1e-05
  %v683 = vrsqrt.pop %v682
  %v684 = vmul.f32 %v672, %v683
  %v685 = vld [vmem:[%s33] sm:$0x1]
  %v687 = vlaneseq
  %v688 = vshrl.u32 %v687, 7
  %v689 = vsub.s32 0, %v688
  %v690 = vrot.slane %v685, %v689
  %v692 = vmul.f32 %v684, %v690
  %v693 = vld [vmem:[%s35] sm:$0x1]
  %v695 = vlaneseq
  %v696 = vshrl.u32 %v695, 7
  %v697 = vsub.s32 0, %v696
  %v698 = vrot.slane %v693, %v697
  %v700 = vadd.f32 %v692, %v698
  %vm701 = vcmp.gt.f32.partialorder %v700, 0.0
  %v702 = vmul.f32 %v700, 0.01
  %v703 = vsel %vm701, %v700, %v702
  %v704 = vld [vmem:[%s37] sm:$0xff]
  %v705 = vld [vmem:[%s37 + $0x8] sm:$0xff]
  %v706 = vld [vmem:[%s39] sm:$0x1]
  %v708 = vlaneseq
  %v709 = vshrl.u32 %v708, 7
  %v710 = vsub.s32 0, %v709
  %v711 = vrot.slane %v706, %v710
  %v714 = vsel %vm663, %v703, 0
  %716 = vmatprep.subr.mxu0 0.0
  %717 = vmatpush1.msra.mxu0 %v704
  %718 = vmatprep.subr.mxu0 0.0
  %719 = vmatpush1.msra.mxu0 %v705
  %720 = vmatprep.subr.mxu0 0.0
  %721 = vmatpush1.msra.mxu0 0.0
  %722 = vmatprep.subr.mxu0 0.0
  %723 = vmatpush1.msra.mxu0 0.0
  %724 = vmatprep.subr.mxu0 0.0
  %725 = vmatpush1.msra.mxu0 0.0
  %726 = vmatprep.subr.mxu0 0.0
  %727 = vmatpush1.msra.mxu0 0.0
  %728 = vmatprep.subr.mxu0 0.0
  %729 = vmatpush1.msra.mxu0 0.0
  %730 = vmatprep.subr.mxu0 0.0
  %731 = vmatpush1.msra.mxu0 0.0
  %732 = vmatprep.subr.mxu0 0.0
  %733 = vmatpush1.msra.mxu0 0.0
  %734 = vmatprep.subr.mxu0 0.0
  %735 = vmatpush1.msra.mxu0 0.0
  %736 = vmatprep.subr.mxu0 0.0
  %737 = vmatpush1.msra.mxu0 0.0
  %738 = vmatprep.subr.mxu0 0.0
  %739 = vmatpush1.msra.mxu0 0.0
  %740 = vmatprep.subr.mxu0 0.0
  %741 = vmatpush1.msra.mxu0 0.0
  %742 = vmatprep.subr.mxu0 0.0
  %743 = vmatpush1.msra.mxu0 0.0
  %744 = vmatprep.subr.mxu0 0.0
  %745 = vmatpush1.msra.mxu0 0.0
  %746 = vmatprep.subr.mxu0 0.0
  %747 = vmatpush1.msra.mxu0 0.0
  %748 = vmatprep.subr.mxu0 0.0
  %749 = vmatpush1.msra.mxu0 0.0
  %750 = vmatprep.subr.mxu0 0.0
  %751 = vmatpush1.msra.mxu0 0.0
  %752 = vmatprep.subr.mxu0 0.0
  %753 = vmatpush1.msra.mxu0 0.0
  %754 = vmatprep.subr.mxu0 0.0
  %755 = vmatpush1.msra.mxu0 0.0
  %756 = vmatprep.subr.mxu0 0.0
  %757 = vmatpush1.msra.mxu0 0.0
  %758 = vmatprep.subr.mxu0 0.0
  %759 = vmatpush1.msra.mxu0 0.0
  %760 = vmatprep.subr.mxu0 0.0
  %761 = vmatpush1.msra.mxu0 0.0
  %762 = vmatprep.subr.mxu0 0.0
  %763 = vmatpush1.msra.mxu0 0.0
  %764 = vmatprep.subr.mxu0 0.0
  %765 = vmatpush1.msra.mxu0 0.0
  %766 = vmatprep.subr.mxu0 0.0
  %767 = vmatpush1.msra.mxu0 0.0
  %768 = vmatprep.subr.mxu0 0.0
  %769 = vmatpush1.msra.mxu0 0.0
  %770 = vmatprep.subr.mxu0 0.0
  %771 = vmatpush1.msra.mxu0 0.0
  %772 = vmatprep.subr.mxu0 0.0
  %773 = vmatpush1.msra.mxu0 0.0
  %774 = vmatprep.subr.mxu0 0.0
  %775 = vmatpush1.msra.mxu0 0.0
  %776 = vmatprep.subr.mxu0 0.0
  %777 = vmatpush1.msra.mxu0 0.0
  %778 = vmatprep.subr.mxu0 0.0
  %779 = vmatpush1.msra.mxu0 0.0
  %780 = vmatprep.mubr.f32.mxu0 0.0
  %781 = vmatmul.mubr.f32.gmra.mrb[0].mxu0 %v714
  %v782 = vpop.f32.mrb[0].mxu0
  %v783 = vadd.f32 %v711, %v782
  %v784 = vpop.f32.mrb[0].mxu0
  %785 = vdwg.mxu0
  %v786 = vld [vmem:[%s41] sm:$0xff]
  %v787 = vld [vmem:[%s41 + $0x8] sm:$0xff]
  %v788 = vld [vmem:[%s43] sm:$0x1]
  %v790 = vlaneseq
  %v791 = vshrl.u32 %v790, 7
  %v792 = vsub.s32 0, %v791
  %v793 = vrot.slane %v788, %v792
  %795 = vmatprep.subr.mxu0 0.0
  %796 = vmatpush1.msra.mxu0 %v786
  %797 = vmatprep.subr.mxu0 0.0
  %798 = vmatpush1.msra.mxu0 %v787
  %799 = vmatprep.subr.mxu0 0.0
  %800 = vmatpush1.msra.mxu0 0.0
  %801 = vmatprep.subr.mxu0 0.0
  %802 = vmatpush1.msra.mxu0 0.0
  %803 = vmatprep.subr.mxu0 0.0
  %804 = vmatpush1.msra.mxu0 0.0
  %805 = vmatprep.subr.mxu0 0.0
  %806 = vmatpush1.msra.mxu0 0.0
  %807 = vmatprep.subr.mxu0 0.0
  %808 = vmatpush1.msra.mxu0 0.0
  %809 = vmatprep.subr.mxu0 0.0
  %810 = vmatpush1.msra.mxu0 0.0
  %811 = vmatprep.subr.mxu0 0.0
  %812 = vmatpush1.msra.mxu0 0.0
  %813 = vmatprep.subr.mxu0 0.0
  %814 = vmatpush1.msra.mxu0 0.0
  %815 = vmatprep.subr.mxu0 0.0
  %816 = vmatpush1.msra.mxu0 0.0
  %817 = vmatprep.subr.mxu0 0.0
  %818 = vmatpush1.msra.mxu0 0.0
  %819 = vmatprep.subr.mxu0 0.0
  %820 = vmatpush1.msra.mxu0 0.0
  %821 = vmatprep.subr.mxu0 0.0
  %822 = vmatpush1.msra.mxu0 0.0
  %823 = vmatprep.subr.mxu0 0.0
  %824 = vmatpush1.msra.mxu0 0.0
  %825 = vmatprep.subr.mxu0 0.0
  %826 = vmatpush1.msra.mxu0 0.0
  %827 = vmatprep.subr.mxu0 0.0
  %828 = vmatpush1.msra.mxu0 0.0
  %829 = vmatprep.subr.mxu0 0.0
  %830 = vmatpush1.msra.mxu0 0.0
  %831 = vmatprep.subr.mxu0 0.0
  %832 = vmatpush1.msra.mxu0 0.0
  %833 = vmatprep.subr.mxu0 0.0
  %834 = vmatpush1.msra.mxu0 0.0
  %835 = vmatprep.subr.mxu0 0.0
  %836 = vmatpush1.msra.mxu0 0.0
  %837 = vmatprep.subr.mxu0 0.0
  %838 = vmatpush1.msra.mxu0 0.0
  %839 = vmatprep.subr.mxu0 0.0
  %840 = vmatpush1.msra.mxu0 0.0
  %841 = vmatprep.subr.mxu0 0.0
  %842 = vmatpush1.msra.mxu0 0.0
  %843 = vmatprep.subr.mxu0 0.0
  %844 = vmatpush1.msra.mxu0 0.0
  %845 = vmatprep.subr.mxu0 0.0
  %846 = vmatpush1.msra.mxu0 0.0
  %847 = vmatprep.subr.mxu0 0.0
  %848 = vmatpush1.msra.mxu0 0.0
  %849 = vmatprep.subr.mxu0 0.0
  %850 = vmatpush1.msra.mxu0 0.0
  %851 = vmatprep.subr.mxu0 0.0
  %852 = vmatpush1.msra.mxu0 0.0
  %853 = vmatprep.subr.mxu0 0.0
  %854 = vmatpush1.msra.mxu0 0.0
  %855 = vmatprep.subr.mxu0 0.0
  %856 = vmatpush1.msra.mxu0 0.0
  %857 = vmatprep.subr.mxu0 0.0
  %858 = vmatpush1.msra.mxu0 0.0
  %859 = vmatprep.mubr.f32.mxu0 0.0
  %860 = vmatmul.mubr.f32.gmra.mrb[0].mxu0 %v714
  %v861 = vpop.f32.mrb[0].mxu0
  %v862 = vadd.f32 %v793, %v861
  %v863 = vpop.f32.mrb[0].mxu0
  %864 = vdwg.mxu0
  %v865 = vld [vmem:[%s45] sm:$0xff]
  %v866 = vld [vmem:[%s45 + $0x8] sm:$0xff]
  %v867 = vld [vmem:[%s47] sm:$0x1]
  %v869 = vlaneseq
  %v870 = vshrl.u32 %v869, 7
  %v871 = vsub.s32 0, %v870
  %v872 = vrot.slane %v867, %v871
  %874 = vmatprep.subr.mxu0 0.0
  %875 = vmatpush1.msra.mxu0 %v865
  %876 = vmatprep.subr.mxu0 0.0
  %877 = vmatpush1.msra.mxu0 %v866
  %878 = vmatprep.subr.mxu0 0.0
  %879 = vmatpush1.msra.mxu0 0.0
  %880 = vmatprep.subr.mxu0 0.0
  %881 = vmatpush1.msra.mxu0 0.0
  %882 = vmatprep.subr.mxu0 0.0
  %883 = vmatpush1.msra.mxu0 0.0
  %884 = vmatprep.subr.mxu0 0.0
  %885 = vmatpush1.msra.mxu0 0.0
  %886 = vmatprep.subr.mxu0 0.0
  %887 = vmatpush1.msra.mxu0 0.0
  %888 = vmatprep.subr.mxu0 0.0
  %889 = vmatpush1.msra.mxu0 0.0
  %890 = vmatprep.subr.mxu0 0.0
  %891 = vmatpush1.msra.mxu0 0.0
  %892 = vmatprep.subr.mxu0 0.0
  %893 = vmatpush1.msra.mxu0 0.0
  %894 = vmatprep.subr.mxu0 0.0
  %895 = vmatpush1.msra.mxu0 0.0
  %896 = vmatprep.subr.mxu0 0.0
  %897 = vmatpush1.msra.mxu0 0.0
  %898 = vmatprep.subr.mxu0 0.0
  %899 = vmatpush1.msra.mxu0 0.0
  %900 = vmatprep.subr.mxu0 0.0
  %901 = vmatpush1.msra.mxu0 0.0
  %902 = vmatprep.subr.mxu0 0.0
  %903 = vmatpush1.msra.mxu0 0.0
  %904 = vmatprep.subr.mxu0 0.0
  %905 = vmatpush1.msra.mxu0 0.0
  %906 = vmatprep.subr.mxu0 0.0
  %907 = vmatpush1.msra.mxu0 0.0
  %908 = vmatprep.subr.mxu0 0.0
  %909 = vmatpush1.msra.mxu0 0.0
  %910 = vmatprep.subr.mxu0 0.0
  %911 = vmatpush1.msra.mxu0 0.0
  %912 = vmatprep.subr.mxu0 0.0
  %913 = vmatpush1.msra.mxu0 0.0
  %914 = vmatprep.subr.mxu0 0.0
  %915 = vmatpush1.msra.mxu0 0.0
  %916 = vmatprep.subr.mxu0 0.0
  %917 = vmatpush1.msra.mxu0 0.0
  %918 = vmatprep.subr.mxu0 0.0
  %919 = vmatpush1.msra.mxu0 0.0
  %920 = vmatprep.subr.mxu0 0.0
  %921 = vmatpush1.msra.mxu0 0.0
  %922 = vmatprep.subr.mxu0 0.0
  %923 = vmatpush1.msra.mxu0 0.0
  %924 = vmatprep.subr.mxu0 0.0
  %925 = vmatpush1.msra.mxu0 0.0
  %926 = vmatprep.subr.mxu0 0.0
  %927 = vmatpush1.msra.mxu0 0.0
  %928 = vmatprep.subr.mxu0 0.0
  %929 = vmatpush1.msra.mxu0 0.0
  %930 = vmatprep.subr.mxu0 0.0
  %931 = vmatpush1.msra.mxu0 0.0
  %932 = vmatprep.subr.mxu0 0.0
  %933 = vmatpush1.msra.mxu0 0.0
  %934 = vmatprep.subr.mxu0 0.0
  %935 = vmatpush1.msra.mxu0 0.0
  %936 = vmatprep.subr.mxu0 0.0
  %937 = vmatpush1.msra.mxu0 0.0
  %938 = vmatprep.mubr.f32.mxu0 0.0
  %939 = vmatmul.mubr.f32.gmra.mrb[0].mxu0 %v714
  %v940 = vpop.f32.mrb[0].mxu0
  %v941 = vadd.f32 %v872, %v940
  %v942 = vpop.f32.mrb[0].mxu0
  %943 = vdwg.mxu0
  %v944 = vld [vmem:[%s7] sm:$0xff]
  %v945 = vmul.f32 %v941, 0.5
  %v946 = vmul.f32 %v945, 1.442695
  %v947 = vpow.pop %v946
  %v948 = vmul.f32 %v944, %v947
  %v949 = vadd.f32 %v948, %v862
  %v950 = vld [vmem:[%s49] sm:$0xff]
  %v951 = vld [vmem:[%s51] sm:$0xff]
  %v952 = vld [vmem:[%s51 + $0x8] sm:$0xf]
  %v954 = vsel %vm326, %v952, 0
  %956 = vmatprep.subr.mxu0 0.0
  %957 = vmatpush1.msra.mxu0 %v951
  %958 = vmatprep.subr.mxu0 0.0
  %959 = vmatpush1.msra.mxu0 %v954
  %960 = vmatprep.subr.mxu0 0.0
  %961 = vmatpush1.msra.mxu0 0.0
  %962 = vmatprep.subr.mxu0 0.0
  %963 = vmatpush1.msra.mxu0 0.0
  %964 = vmatprep.subr.mxu0 0.0
  %965 = vmatpush1.msra.mxu0 0.0
  %966 = vmatprep.subr.mxu0 0.0
  %967 = vmatpush1.msra.mxu0 0.0
  %968 = vmatprep.subr.mxu0 0.0
  %969 = vmatpush1.msra.mxu0 0.0
  %970 = vmatprep.subr.mxu0 0.0
  %971 = vmatpush1.msra.mxu0 0.0
  %972 = vmatprep.subr.mxu0 0.0
  %973 = vmatpush1.msra.mxu0 0.0
  %974 = vmatprep.subr.mxu0 0.0
  %975 = vmatpush1.msra.mxu0 0.0
  %976 = vmatprep.subr.mxu0 0.0
  %977 = vmatpush1.msra.mxu0 0.0
  %978 = vmatprep.subr.mxu0 0.0
  %979 = vmatpush1.msra.mxu0 0.0
  %980 = vmatprep.subr.mxu0 0.0
  %981 = vmatpush1.msra.mxu0 0.0
  %982 = vmatprep.subr.mxu0 0.0
  %983 = vmatpush1.msra.mxu0 0.0
  %984 = vmatprep.subr.mxu0 0.0
  %985 = vmatpush1.msra.mxu0 0.0
  %986 = vmatprep.subr.mxu0 0.0
  %987 = vmatpush1.msra.mxu0 0.0
  %988 = vmatprep.subr.mxu0 0.0
  %989 = vmatpush1.msra.mxu0 0.0
  %990 = vmatprep.subr.mxu0 0.0
  %991 = vmatpush1.msra.mxu0 0.0
  %992 = vmatprep.subr.mxu0 0.0
  %993 = vmatpush1.msra.mxu0 0.0
  %994 = vmatprep.subr.mxu0 0.0
  %995 = vmatpush1.msra.mxu0 0.0
  %996 = vmatprep.subr.mxu0 0.0
  %997 = vmatpush1.msra.mxu0 0.0
  %998 = vmatprep.subr.mxu0 0.0
  %999 = vmatpush1.msra.mxu0 0.0
  %1000 = vmatprep.subr.mxu0 0.0
  %1001 = vmatpush1.msra.mxu0 0.0
  %1002 = vmatprep.subr.mxu0 0.0
  %1003 = vmatpush1.msra.mxu0 0.0
  %1004 = vmatprep.subr.mxu0 0.0
  %1005 = vmatpush1.msra.mxu0 0.0
  %1006 = vmatprep.subr.mxu0 0.0
  %1007 = vmatpush1.msra.mxu0 0.0
  %1008 = vmatprep.subr.mxu0 0.0
  %1009 = vmatpush1.msra.mxu0 0.0
  %1010 = vmatprep.subr.mxu0 0.0
  %1011 = vmatpush1.msra.mxu0 0.0
  %1012 = vmatprep.subr.mxu0 0.0
  %1013 = vmatpush1.msra.mxu0 0.0
  %1014 = vmatprep.subr.mxu0 0.0
  %1015 = vmatpush1.msra.mxu0 0.0
  %1016 = vmatprep.subr.mxu0 0.0
  %1017 = vmatpush1.msra.mxu0 0.0
  %1018 = vmatprep.subr.mxu0 0.0
  %1019 = vmatpush1.msra.mxu0 0.0
  %1020 = vmatprep.mubr.f32.mxu0 0.0
  %1021 = vmatmul.mubr.f32.gmra.mrb[0].mxu0 %v324
  %v1022 = vpop.f32.mrb[0].mxu0
  %v1023 = vadd.f32 0.0, %v1022
  %v1024 = vpop.f32.mrb[0].mxu0
  %1025 = vdwg.mxu0
  %vm1026 = vcmask 64512
  %v1028 = vsel %vm1026, %v949, 0
  %1030 = vmatprep.subr.mxu0 0.0
  %1031 = vmatpush1.msra.mxu0 %v950
  %1032 = vmatprep.subr.mxu0 0.0
  %1033 = vmatpush1.msra.mxu0 0.0
  %1034 = vmatprep.subr.mxu0 0.0
  %1035 = vmatpush1.msra.mxu0 0.0
  %1036 = vmatprep.subr.mxu0 0.0
  %1037 = vmatpush1.msra.mxu0 0.0
  %1038 = vmatprep.subr.mxu0 0.0
  %1039 = vmatpush1.msra.mxu0 0.0
  %1040 = vmatprep.subr.mxu0 0.0
  %1041 = vmatpush1.msra.mxu0 0.0
  %1042 = vmatprep.subr.mxu0 0.0
  %1043 = vmatpush1.msra.mxu0 0.0
  %1044 = vmatprep.subr.mxu0 0.0
  %1045 = vmatpush1.msra.mxu0 0.0
  %1046 = vmatprep.subr.mxu0 0.0
  %1047 = vmatpush1.msra.mxu0 0.0
  %1048 = vmatprep.subr.mxu0 0.0
  %1049 = vmatpush1.msra.mxu0 0.0
  %1050 = vmatprep.subr.mxu0 0.0
  %1051 = vmatpush1.msra.mxu0 0.0
  %1052 = vmatprep.subr.mxu0 0.0
  %1053 = vmatpush1.msra.mxu0 0.0
  %1054 = vmatprep.subr.mxu0 0.0
  %1055 = vmatpush1.msra.mxu0 0.0
  %1056 = vmatprep.subr.mxu0 0.0
  %1057 = vmatpush1.msra.mxu0 0.0
  %1058 = vmatprep.subr.mxu0 0.0
  %1059 = vmatpush1.msra.mxu0 0.0
  %1060 = vmatprep.subr.mxu0 0.0
  %1061 = vmatpush1.msra.mxu0 0.0
  %1062 = vmatprep.subr.mxu0 0.0
  %1063 = vmatpush1.msra.mxu0 0.0
  %1064 = vmatprep.subr.mxu0 0.0
  %1065 = vmatpush1.msra.mxu0 0.0
  %1066 = vmatprep.subr.mxu0 0.0
  %1067 = vmatpush1.msra.mxu0 0.0
  %1068 = vmatprep.subr.mxu0 0.0
  %1069 = vmatpush1.msra.mxu0 0.0
  %1070 = vmatprep.subr.mxu0 0.0
  %1071 = vmatpush1.msra.mxu0 0.0
  %1072 = vmatprep.subr.mxu0 0.0
  %1073 = vmatpush1.msra.mxu0 0.0
  %1074 = vmatprep.subr.mxu0 0.0
  %1075 = vmatpush1.msra.mxu0 0.0
  %1076 = vmatprep.subr.mxu0 0.0
  %1077 = vmatpush1.msra.mxu0 0.0
  %1078 = vmatprep.subr.mxu0 0.0
  %1079 = vmatpush1.msra.mxu0 0.0
  %1080 = vmatprep.subr.mxu0 0.0
  %1081 = vmatpush1.msra.mxu0 0.0
  %1082 = vmatprep.subr.mxu0 0.0
  %1083 = vmatpush1.msra.mxu0 0.0
  %1084 = vmatprep.subr.mxu0 0.0
  %1085 = vmatpush1.msra.mxu0 0.0
  %1086 = vmatprep.subr.mxu0 0.0
  %1087 = vmatpush1.msra.mxu0 0.0
  %1088 = vmatprep.subr.mxu0 0.0
  %1089 = vmatpush1.msra.mxu0 0.0
  %1090 = vmatprep.subr.mxu0 0.0
  %1091 = vmatpush1.msra.mxu0 0.0
  %1092 = vmatprep.subr.mxu0 0.0
  %1093 = vmatpush1.msra.mxu0 0.0
  %1094 = vmatprep.mubr.f32.mxu0 0.0
  %1095 = vmatmul.mubr.f32.gmra.mrb[0].mxu0 %v1028
  %v1096 = vpop.f32.mrb[0].mxu0
  %v1097 = vadd.f32 %v1023, %v1096
  %v1098 = vpop.f32.mrb[0].mxu0
  %1099 = vdwg.mxu0
  %v1100 = vld [vmem:[%s53] sm:$0x1]
  %v1102 = vlaneseq
  %v1103 = vshrl.u32 %v1102, 7
  %v1104 = vsub.s32 0, %v1103
  %v1105 = vrot.slane %v1100, %v1104
  %v1107 = vadd.f32 %v1097, %v1105
  %v1108 = vsel %vm663, %v1107, 0.0
  %v1109 = vrot.slane %v1108, 4
  %v1110 = vadd.f32 %v1108, %v1109
  %v1111 = vrot.slane %v1110, 2
  %v1112 = vadd.f32 %v1110, %v1111
  %v1113 = vrot.slane %v1112, 1
  %v1114 = vadd.f32 %v1112, %v1113
  %v1115 = vmul.f32 %v1114, %v417
  %v1116 = vsub.f32 %v1107, %v1115
  %v1117 = vmul.f32 %v1116, %v1116
  %v1118 = vsel %vm663, %v1117, 0.0
  %v1119 = vrot.slane %v1118, 4
  %v1120 = vadd.f32 %v1118, %v1119
  %v1121 = vrot.slane %v1120, 2
  %v1122 = vadd.f32 %v1120, %v1121
  %v1123 = vrot.slane %v1122, 1
  %v1124 = vadd.f32 %v1122, %v1123
  %v1125 = vmul.f32 %v1124, %v417
  %v1126 = vadd.f32 %v1125, 1e-05
  %v1127 = vrsqrt.pop %v1126
  %v1128 = vmul.f32 %v1116, %v1127
  %v1129 = vld [vmem:[%s55] sm:$0x1]
  %v1131 = vlaneseq
  %v1132 = vshrl.u32 %v1131, 7
  %v1133 = vsub.s32 0, %v1132
  %v1134 = vrot.slane %v1129, %v1133
  %v1136 = vmul.f32 %v1128, %v1134
  %v1137 = vld [vmem:[%s57] sm:$0x1]
  %v1139 = vlaneseq
  %v1140 = vshrl.u32 %v1139, 7
  %v1141 = vsub.s32 0, %v1140
  %v1142 = vrot.slane %v1137, %v1141
  %v1144 = vadd.f32 %v1136, %v1142
  %vm1145 = vcmp.gt.f32.partialorder %v1144, 0.0
  %v1146 = vmul.f32 %v1144, 0.01
  %v1147 = vsel %vm1145, %v1144, %v1146
  %v1148 = vld [vmem:[%s59] sm:$0xff]
  %v1149 = vld [vmem:[%s59 + $0x8] sm:$0xff]
  %v1150 = vld [vmem:[%s61] sm:$0x1]
  %v1152 = vlaneseq
  %v1153 = vshrl.u32 %v1152, 7
  %v1154 = vsub.s32 0, %v1153
  %v1155 = vrot.slane %v1150, %v1154
  %v1158 = vsel %vm663, %v1147, 0
  %1160 = vmatprep.subr.mxu0 0.0
  %1161 = vmatpush1.msra.mxu0 %v1148
  %1162 = vmatprep.subr.mxu0 0.0
  %1163 = vmatpush1.msra.mxu0 %v1149
  %1164 = vmatprep.subr.mxu0 0.0
  %1165 = vmatpush1.msra.mxu0 0.0
  %1166 = vmatprep.subr.mxu0 0.0
  %1167 = vmatpush1.msra.mxu0 0.0
  %1168 = vmatprep.subr.mxu0 0.0
  %1169 = vmatpush1.msra.mxu0 0.0
  %1170 = vmatprep.subr.mxu0 0.0
  %1171 = vmatpush1.msra.mxu0 0.0
  %1172 = vmatprep.subr.mxu0 0.0
  %1173 = vmatpush1.msra.mxu0 0.0
  %1174 = vmatprep.subr.mxu0 0.0
  %1175 = vmatpush1.msra.mxu0 0.0
  %1176 = vmatprep.subr.mxu0 0.0
  %1177 = vmatpush1.msra.mxu0 0.0
  %1178 = vmatprep.subr.mxu0 0.0
  %1179 = vmatpush1.msra.mxu0 0.0
  %1180 = vmatprep.subr.mxu0 0.0
  %1181 = vmatpush1.msra.mxu0 0.0
  %1182 = vmatprep.subr.mxu0 0.0
  %1183 = vmatpush1.msra.mxu0 0.0
  %1184 = vmatprep.subr.mxu0 0.0
  %1185 = vmatpush1.msra.mxu0 0.0
  %1186 = vmatprep.subr.mxu0 0.0
  %1187 = vmatpush1.msra.mxu0 0.0
  %1188 = vmatprep.subr.mxu0 0.0
  %1189 = vmatpush1.msra.mxu0 0.0
  %1190 = vmatprep.subr.mxu0 0.0
  %1191 = vmatpush1.msra.mxu0 0.0
  %1192 = vmatprep.subr.mxu0 0.0
  %1193 = vmatpush1.msra.mxu0 0.0
  %1194 = vmatprep.subr.mxu0 0.0
  %1195 = vmatpush1.msra.mxu0 0.0
  %1196 = vmatprep.subr.mxu0 0.0
  %1197 = vmatpush1.msra.mxu0 0.0
  %1198 = vmatprep.subr.mxu0 0.0
  %1199 = vmatpush1.msra.mxu0 0.0
  %1200 = vmatprep.subr.mxu0 0.0
  %1201 = vmatpush1.msra.mxu0 0.0
  %1202 = vmatprep.subr.mxu0 0.0
  %1203 = vmatpush1.msra.mxu0 0.0
  %1204 = vmatprep.subr.mxu0 0.0
  %1205 = vmatpush1.msra.mxu0 0.0
  %1206 = vmatprep.subr.mxu0 0.0
  %1207 = vmatpush1.msra.mxu0 0.0
  %1208 = vmatprep.subr.mxu0 0.0
  %1209 = vmatpush1.msra.mxu0 0.0
  %1210 = vmatprep.subr.mxu0 0.0
  %1211 = vmatpush1.msra.mxu0 0.0
  %1212 = vmatprep.subr.mxu0 0.0
  %1213 = vmatpush1.msra.mxu0 0.0
  %1214 = vmatprep.subr.mxu0 0.0
  %1215 = vmatpush1.msra.mxu0 0.0
  %1216 = vmatprep.subr.mxu0 0.0
  %1217 = vmatpush1.msra.mxu0 0.0
  %1218 = vmatprep.subr.mxu0 0.0
  %1219 = vmatpush1.msra.mxu0 0.0
  %1220 = vmatprep.subr.mxu0 0.0
  %1221 = vmatpush1.msra.mxu0 0.0
  %1222 = vmatprep.subr.mxu0 0.0
  %1223 = vmatpush1.msra.mxu0 0.0
  %1224 = vmatprep.mubr.f32.mxu0 0.0
  %1225 = vmatmul.mubr.f32.gmra.mrb[0].mxu0 %v1158
  %v1226 = vpop.f32.mrb[0].mxu0
  %v1227 = vadd.f32 %v1155, %v1226
  %v1228 = vpop.f32.mrb[0].mxu0
  %1229 = vdwg.mxu0
  %v1230 = vsel %vm246, %v1227, 0.0
  %v1231 = vrot.slane %v1230, 4
  %v1232 = vadd.f32 %v1230, %v1231
  %v1233 = vrot.slane %v1232, 2
  %v1234 = vadd.f32 %v1232, %v1233
  %v1235 = vrot.slane %v1234, 1
  %v1236 = vadd.f32 %v1234, %v1235
  %v1237 = vmul.f32 %v1236, %v417
  %v1238 = vsub.f32 %v1227, %v1237
  %v1239 = vmul.f32 %v1238, %v1238
  %v1240 = vsel %vm246, %v1239, 0.0
  %v1241 = vrot.slane %v1240, 4
  %v1242 = vadd.f32 %v1240, %v1241
  %v1243 = vrot.slane %v1242, 2
  %v1244 = vadd.f32 %v1242, %v1243
  %v1245 = vrot.slane %v1244, 1
  %v1246 = vadd.f32 %v1244, %v1245
  %v1247 = vmul.f32 %v1246, %v417
  %v1248 = vadd.f32 %v1247, 1e-05
  %v1249 = vrsqrt.pop %v1248
  %v1250 = vmul.f32 %v1238, %v1249
  %v1251 = vld [vmem:[%s63] sm:$0x1]
  %v1253 = vlaneseq
  %v1254 = vshrl.u32 %v1253, 7
  %v1255 = vsub.s32 0, %v1254
  %v1256 = vrot.slane %v1251, %v1255
  %v1258 = vmul.f32 %v1250, %v1256
  %v1259 = vld [vmem:[%s65] sm:$0x1]
  %v1261 = vlaneseq
  %v1262 = vshrl.u32 %v1261, 7
  %v1263 = vsub.s32 0, %v1262
  %v1264 = vrot.slane %v1259, %v1263
  %v1266 = vadd.f32 %v1258, %v1264
  %vm1267 = vcmp.gt.f32.partialorder %v1266, 0.0
  %v1268 = vmul.f32 %v1266, 0.01
  %v1269 = vsel %vm1267, %v1266, %v1268
  %v1270 = vld [vmem:[%s67] sm:$0xff]
  %v1271 = vld [vmem:[%s67 + $0x8] sm:$0xff]
  %v1272 = vld [vmem:[%s67 + $0x10] sm:$0xff]
  %v1273 = vld [vmem:[%s67 + $0x18] sm:$0xff]
  %v1274 = vld [vmem:[%s69] sm:$0x1]
  %v1276 = vlaneseq
  %v1277 = vshrl.u32 %v1276, 7
  %v1278 = vsub.s32 0, %v1277
  %v1279 = vrot.slane %v1274, %v1278
  %v1282 = vsel %vm246, %v1269, 0
  %1284 = vmatprep.subr.mxu0 0.0
  %1285 = vmatpush1.msra.mxu0 %v1270
  %1286 = vmatprep.subr.mxu0 0.0
  %1287 = vmatpush1.msra.mxu0 %v1271
  %1288 = vmatprep.subr.mxu0 0.0
  %1289 = vmatpush1.msra.mxu0 %v1272
  %1290 = vmatprep.subr.mxu0 0.0
  %1291 = vmatpush1.msra.mxu0 %v1273
  %1292 = vmatprep.subr.mxu0 0.0
  %1293 = vmatpush1.msra.mxu0 0.0
  %1294 = vmatprep.subr.mxu0 0.0
  %1295 = vmatpush1.msra.mxu0 0.0
  %1296 = vmatprep.subr.mxu0 0.0
  %1297 = vmatpush1.msra.mxu0 0.0
  %1298 = vmatprep.subr.mxu0 0.0
  %1299 = vmatpush1.msra.mxu0 0.0
  %1300 = vmatprep.subr.mxu0 0.0
  %1301 = vmatpush1.msra.mxu0 0.0
  %1302 = vmatprep.subr.mxu0 0.0
  %1303 = vmatpush1.msra.mxu0 0.0
  %1304 = vmatprep.subr.mxu0 0.0
  %1305 = vmatpush1.msra.mxu0 0.0
  %1306 = vmatprep.subr.mxu0 0.0
  %1307 = vmatpush1.msra.mxu0 0.0
  %1308 = vmatprep.subr.mxu0 0.0
  %1309 = vmatpush1.msra.mxu0 0.0
  %1310 = vmatprep.subr.mxu0 0.0
  %1311 = vmatpush1.msra.mxu0 0.0
  %1312 = vmatprep.subr.mxu0 0.0
  %1313 = vmatpush1.msra.mxu0 0.0
  %1314 = vmatprep.subr.mxu0 0.0
  %1315 = vmatpush1.msra.mxu0 0.0
  %1316 = vmatprep.subr.mxu0 0.0
  %1317 = vmatpush1.msra.mxu0 0.0
  %1318 = vmatprep.subr.mxu0 0.0
  %1319 = vmatpush1.msra.mxu0 0.0
  %1320 = vmatprep.subr.mxu0 0.0
  %1321 = vmatpush1.msra.mxu0 0.0
  %1322 = vmatprep.subr.mxu0 0.0
  %1323 = vmatpush1.msra.mxu0 0.0
  %1324 = vmatprep.subr.mxu0 0.0
  %1325 = vmatpush1.msra.mxu0 0.0
  %1326 = vmatprep.subr.mxu0 0.0
  %1327 = vmatpush1.msra.mxu0 0.0
  %1328 = vmatprep.subr.mxu0 0.0
  %1329 = vmatpush1.msra.mxu0 0.0
  %1330 = vmatprep.subr.mxu0 0.0
  %1331 = vmatpush1.msra.mxu0 0.0
  %1332 = vmatprep.subr.mxu0 0.0
  %1333 = vmatpush1.msra.mxu0 0.0
  %1334 = vmatprep.subr.mxu0 0.0
  %1335 = vmatpush1.msra.mxu0 0.0
  %1336 = vmatprep.subr.mxu0 0.0
  %1337 = vmatpush1.msra.mxu0 0.0
  %1338 = vmatprep.subr.mxu0 0.0
  %1339 = vmatpush1.msra.mxu0 0.0
  %1340 = vmatprep.subr.mxu0 0.0
  %1341 = vmatpush1.msra.mxu0 0.0
  %1342 = vmatprep.subr.mxu0 0.0
  %1343 = vmatpush1.msra.mxu0 0.0
  %1344 = vmatprep.subr.mxu0 0.0
  %1345 = vmatpush1.msra.mxu0 0.0
  %1346 = vmatprep.subr.mxu0 0.0
  %1347 = vmatpush1.msra.mxu0 0.0
  %1348 = vmatprep.mubr.f32.mxu0 0.0
  %1349 = vmatmul.mubr.f32.gmra.mrb[0].mxu0 %v1282
  %v1350 = vpop.f32.mrb[0].mxu0
  %v1351 = vadd.f32 %v1279, %v1350
  %v1352 = vpop.f32.mrb[0].mxu0
  %1353 = vdwg.mxu0
  %v1354 = vsel %vm409, %v1351, 0.0
  %v1355 = vrot.slane %v1354, 4
  %v1356 = vadd.f32 %v1354, %v1355
  %v1357 = vrot.slane %v1356, 2
  %v1358 = vadd.f32 %v1356, %v1357
  %v1359 = vrot.slane %v1358, 1
  %v1360 = vadd.f32 %v1358, %v1359
  %v1361 = vmul.f32 %v1360, %v417
  %v1362 = vsub.f32 %v1351, %v1361
  %v1363 = vmul.f32 %v1362, %v1362
  %v1364 = vsel %vm409, %v1363, 0.0
  %v1365 = vrot.slane %v1364, 4
  %v1366 = vadd.f32 %v1364, %v1365
  %v1367 = vrot.slane %v1366, 2
  %v1368 = vadd.f32 %v1366, %v1367
  %v1369 = vrot.slane %v1368, 1
  %v1370 = vadd.f32 %v1368, %v1369
  %v1371 = vmul.f32 %v1370, %v417
  %v1372 = vadd.f32 %v1371, 1e-05
  %v1373 = vrsqrt.pop %v1372
  %v1374 = vmul.f32 %v1362, %v1373
  %v1375 = vld [vmem:[%s71] sm:$0x1]
  %v1377 = vlaneseq
  %v1378 = vshrl.u32 %v1377, 7
  %v1379 = vsub.s32 0, %v1378
  %v1380 = vrot.slane %v1375, %v1379
  %v1382 = vmul.f32 %v1374, %v1380
  %v1383 = vld [vmem:[%s73] sm:$0x1]
  %v1385 = vlaneseq
  %v1386 = vshrl.u32 %v1385, 7
  %v1387 = vsub.s32 0, %v1386
  %v1388 = vrot.slane %v1383, %v1387
  %v1390 = vadd.f32 %v1382, %v1388
  %vm1391 = vcmp.gt.f32.partialorder %v1390, 0.0
  %v1392 = vmul.f32 %v1390, 0.01
  %v1393 = vsel %vm1391, %v1390, %v1392
  %v1394 = vld [vmem:[%s75] sm:$0xff]
  %v1395 = vld [vmem:[%s75 + $0x8] sm:$0xff]
  %v1396 = vld [vmem:[%s75 + $0x10] sm:$0xff]
  %v1397 = vld [vmem:[%s75 + $0x18] sm:$0xff]
  %v1398 = vld [vmem:[%s75 + $0x20] sm:$0xff]
  %v1399 = vld [vmem:[%s75 + $0x28] sm:$0xff]
  %v1400 = vld [vmem:[%s75 + $0x30] sm:$0xff]
  %v1401 = vld [vmem:[%s75 + $0x38] sm:$0xff]
  %v1402 = vld [vmem:[%s77] sm:$0x1]
  %v1404 = vlaneseq
  %v1405 = vshrl.u32 %v1404, 7
  %v1406 = vsub.s32 0, %v1405
  %v1407 = vrot.slane %v1402, %v1406
  %v1410 = vsel %vm409, %v1393, 0
  %1412 = vmatprep.subr.mxu0 0.0
  %1413 = vmatpush1.msra.mxu0 %v1394
  %1414 = vmatprep.subr.mxu0 0.0
  %1415 = vmatpush1.msra.mxu0 %v1395
  %1416 = vmatprep.subr.mxu0 0.0
  %1417 = vmatpush1.msra.mxu0 %v1396
  %1418 = vmatprep.subr.mxu0 0.0
  %1419 = vmatpush1.msra.mxu0 %v1397
  %1420 = vmatprep.subr.mxu0 0.0
  %1421 = vmatpush1.msra.mxu0 %v1398
  %1422 = vmatprep.subr.mxu0 0.0
  %1423 = vmatpush1.msra.mxu0 %v1399
  %1424 = vmatprep.subr.mxu0 0.0
  %1425 = vmatpush1.msra.mxu0 %v1400
  %1426 = vmatprep.subr.mxu0 0.0
  %1427 = vmatpush1.msra.mxu0 %v1401
  %1428 = vmatprep.subr.mxu0 0.0
  %1429 = vmatpush1.msra.mxu0 0.0
  %1430 = vmatprep.subr.mxu0 0.0
  %1431 = vmatpush1.msra.mxu0 0.0
  %1432 = vmatprep.subr.mxu0 0.0
  %1433 = vmatpush1.msra.mxu0 0.0
  %1434 = vmatprep.subr.mxu0 0.0
  %1435 = vmatpush1.msra.mxu0 0.0
  %1436 = vmatprep.subr.mxu0 0.0
  %1437 = vmatpush1.msra.mxu0 0.0
  %1438 = vmatprep.subr.mxu0 0.0
  %1439 = vmatpush1.msra.mxu0 0.0
  %1440 = vmatprep.subr.mxu0 0.0
  %1441 = vmatpush1.msra.mxu0 0.0
  %1442 = vmatprep.subr.mxu0 0.0
  %1443 = vmatpush1.msra.mxu0 0.0
  %1444 = vmatprep.subr.mxu0 0.0
  %1445 = vmatpush1.msra.mxu0 0.0
  %1446 = vmatprep.subr.mxu0 0.0
  %1447 = vmatpush1.msra.mxu0 0.0
  %1448 = vmatprep.subr.mxu0 0.0
  %1449 = vmatpush1.msra.mxu0 0.0
  %1450 = vmatprep.subr.mxu0 0.0
  %1451 = vmatpush1.msra.mxu0 0.0
  %1452 = vmatprep.subr.mxu0 0.0
  %1453 = vmatpush1.msra.mxu0 0.0
  %1454 = vmatprep.subr.mxu0 0.0
  %1455 = vmatpush1.msra.mxu0 0.0
  %1456 = vmatprep.subr.mxu0 0.0
  %1457 = vmatpush1.msra.mxu0 0.0
  %1458 = vmatprep.subr.mxu0 0.0
  %1459 = vmatpush1.msra.mxu0 0.0
  %1460 = vmatprep.subr.mxu0 0.0
  %1461 = vmatpush1.msra.mxu0 0.0
  %1462 = vmatprep.subr.mxu0 0.0
  %1463 = vmatpush1.msra.mxu0 0.0
  %1464 = vmatprep.subr.mxu0 0.0
  %1465 = vmatpush1.msra.mxu0 0.0
  %1466 = vmatprep.subr.mxu0 0.0
  %1467 = vmatpush1.msra.mxu0 0.0
  %1468 = vmatprep.subr.mxu0 0.0
  %1469 = vmatpush1.msra.mxu0 0.0
  %1470 = vmatprep.subr.mxu0 0.0
  %1471 = vmatpush1.msra.mxu0 0.0
  %1472 = vmatprep.subr.mxu0 0.0
  %1473 = vmatpush1.msra.mxu0 0.0
  %1474 = vmatprep.subr.mxu0 0.0
  %1475 = vmatpush1.msra.mxu0 0.0
  %1476 = vmatprep.mubr.f32.mxu0 0.0
  %1477 = vmatmul.mubr.f32.gmra.mrb[0].mxu0 %v1410
  %v1478 = vpop.f32.mrb[0].mxu0
  %v1479 = vadd.f32 %v1407, %v1478
  %v1480 = vpop.f32.mrb[0].mxu0
  %1481 = vdwg.mxu0
  %1483 = vrot.lane.b32.xlu0 %v862, 56
  %v1484 = vpop.permute.xlu0 %1483
  %1487 = vrot.lane.b32.xlu0 %v941, 64
  %v1488 = vpop.permute.xlu0 %1487
  %1491 = vrot.lane.b32.xlu0 %v783, 72
  %v1492 = vpop.permute.xlu0 %1491
  %vm1494 = vcmask 457728
  %v1495 = vsel %vm1494, %v1479, %v1484
  %v1496 = vsel %vm409, %v1495, %v1488
  %vm1497 = vcmask 588800
  %v1498 = vsel %vm1497, %v1496, %v1492
  %vm1499 = vcmask 850944
  %v1500 = vsel %vm1499, %v1498, 0.0
  %1501 = vst [vmem:[%s79] sm:$0xff] %v1500
  // Predicated region
  $region158: #{generator_forward.1} parent=0 // pred_check
    _
  $region159: #{generator_forward.1} parent=0 // pred_check_branch
    %1503 = sbr.rel (0) target = $region161
  $region160: #{generator_forward.1} parent=0 // pred_region
    _
  $region161: #{generator_forward.1} parent=0 // pred_fallthru
    _
  // Predicated region
  $region162: #{generator_forward.1} parent=0 // pred_check
    _
  $region163: #{generator_forward.1} parent=0 // pred_check_branch
    %1505 = sbr.rel (0) target = $region165
  $region164: #{generator_forward.1} parent=0 // pred_region
    _
  $region165: #{generator_forward.1} parent=0 // pred_fallthru
    _

</llo_original>
